<compile_context>
chip_gen: v5e
topology: v5e:2x2
jax: 0.10.0
libtpu: 0.0.40
codegen_flags: <defaults>
</compile_context>

<pallas_src>
import functools

import jax
import jax.numpy as jnp
from jax.experimental import pallas as pl
from jax.experimental.pallas import tpu as pltpu

_LANE = 128
_SINGLE_BUFFER_WEIGHTS_OK = None  # resolved lazily on the first forward call


def _round_up(x, m):
    return (x + m - 1) // m * m


def _cdiv(a, b):
    return -(-a // b)


def _vmem_capacity_bytes():
    """Per-core VMEM capacity; conservative 64 MiB (v7x) fallback."""
    try:
        info = pltpu.get_tpu_info()
        cap = getattr(info, "vmem_capacity_bytes", None)
        if cap:
            return int(cap)
    except Exception:
        pass
    return 64 << 20


# ---------------------------------------------------------------------------
# Kernel: whole 6-layer forward fused; weights are VMEM-resident.
# ---------------------------------------------------------------------------
def mlp_kernel(x_ref, *refs):
    """refs = (w1, b1, ..., w6, b6, o)."""
    *wb_refs, o_ref = refs
    n_layers = len(wb_refs) // 2

    h = x_ref[...]                                  # f32 activations
    for l in range(n_layers):
        w = wb_refs[2 * l][...]                     # MXU operand dtype (bf16/f32)
        b = wb_refs[2 * l + 1][...]                 # f32 bias
        # MXU matmul with f32 accumulation; bias add + LeakyReLU in f32.
        h = jnp.dot(h.astype(w.dtype), w, preferred_element_type=jnp.float32) + b
        if l < n_layers - 1:
            h = jnp.maximum(h, 0.2 * h)             # LeakyReLU(0.2), 2 VPU ops
    o_ref[...] = h.astype(o_ref.dtype)


# ---------------------------------------------------------------------------
# One-time parameter preparation (amortized across forward calls).
# ---------------------------------------------------------------------------
def prepare_params(params, compute_dtype=jnp.bfloat16, lane=_LANE):
    """Pad feature dims to multiples of `lane` (lane-dense layout) and cast the
    weights to the MXU operand dtype once.  The input dim of the FIRST layer is
    left unpadded so x itself needs no feature padding.  Zero padding keeps the
    math exactly equivalent to the unpadded MLP."""
    flat = []
    for l, (w, b) in enumerate(params):
        wi, wo = w.shape
        di = wi if l == 0 else _round_up(wi, lane)
        do = _round_up(wo, lane)
        w_p = jnp.pad(w.astype(compute_dtype), ((0, di - wi), (0, do - wo)))
        b_p = jnp.pad(b.astype(jnp.float32).reshape(1, -1), ((0, 0), (0, do - wo)))
        flat.extend([w_p, b_p])
    return tuple(flat)


# ---------------------------------------------------------------------------
# Forward pass.
# ---------------------------------------------------------------------------
@functools.partial(
    jax.jit, static_argnames=("nout", "batch_tile", "single_buffer_weights"))
def _mlp_forward_impl(x, flat_params, nout, batch_tile, single_buffer_weights):
    B, nin = x.shape
    ws = flat_params[0::2]
    bs = flat_params[1::2]
    assert ws[0].shape[0] == nin, "x feature dim must match first layer"
    in_dims = [w.shape[0] for w in ws]
    out_dims = [w.shape[1] for w in ws]
    nout_p = out_dims[-1]
    compute_dtype = ws[0].dtype
    cbytes = compute_dtype.itemsize
    out_dtype = x.dtype

    # Batch tile: large (amortize ~0.35us/step overhead), 256-aligned for MXU
    # M-fill, capped so the grid has >= 2 steps when B allows (v7x megacore),
    # and never larger than B (partial / full-extent blocks cover the rest —
    # no batch zero-padding pass in HBM).
    bt = max(256, min(_round_up(batch_tile, 256), _round_up(_cdiv(B, 2), 256)))
    bt = min(bt, B)
    grid = (_cdiv(B, bt),)

    weight_mode = pl.Buffered(1) if single_buffer_weights else None

    in_specs = [pl.BlockSpec((bt, nin), lambda i: (i, 0))]
    for di, do in zip(in_dims, out_dims):
        if weight_mode is not None:
            # Grid-constant blocks: single-buffer (no benefit from 2x VMEM).
            in_specs.append(
                pl.BlockSpec((di, do), lambda i: (0, 0), pipeline_mode=weight_mode))
            in_specs.append(
                pl.BlockSpec((1, do), lambda i: (0, 0), pipeline_mode=weight_mode))
        else:
            in_specs.append(pl.BlockSpec((di, do), lambda i: (0, 0)))
            in_specs.append(pl.BlockSpec((1, do), lambda i: (0, 0)))
    out_spec = pl.BlockSpec((bt, nout_p), lambda i: (i, 0))

    # VMEM budget: double-buffered x/out blocks, 1x (or 2x) resident weights,
    # headroom for the live f32 activation tiles + bf16 matmul-operand copies.
    w_elems = sum(di * do for di, do in zip(in_dims, out_dims))
    b_elems = sum(out_dims)
    w_buf = 1 if single_buffer_weights else 2
    max_feat = max(out_dims + [nin])
    vmem_bytes = (2 * bt * nin * x.dtype.itemsize
                  + 2 * bt * nout_p * out_dtype.itemsize
                  + w_buf * w_elems * cbytes
                  + w_buf * b_elems * 4
                  + 4 * bt * max_feat * 4)
    vmem_limit = int(min(vmem_bytes + (8 << 20),
                         _vmem_capacity_bytes() - (2 << 20)))

    flops = 2 * B * w_elems
    bytes_accessed = (B * nin * x.dtype.itemsize
                      + B * nout_p * out_dtype.itemsize
                      + w_elems * cbytes + b_elems * 4)
    cost = pl.CostEstimate(flops=flops, transcendentals=0,
                           bytes_accessed=bytes_accessed)

    out_p = pl.pallas_call(
        mlp_kernel,
        out_shape=jax.ShapeDtypeStruct((B, nout_p), out_dtype),
        grid_spec=pltpu.PrefetchScalarGridSpec(
            num_scalar_prefetch=0,
            grid=grid,
            in_specs=in_specs,
            out_specs=out_spec,
        ),
        compiler_params=pltpu.CompilerParams(
            dimension_semantics=("parallel",),
            vmem_limit_bytes=vmem_limit,
        ),
        cost_estimate=cost,
    )(x, *flat_params)

    # Only slice when the real nout is not 128-aligned (skip the extra HBM
    # pass when it is).  dtype already matches x.dtype -> no trailing astype.
    if nout_p != nout:
        out_p = out_p[:, :nout]
    return out_p


def mlp_forward(x, flat_params, nout=None, batch_tile=2048):
    """x: (B, nin). flat_params: output of prepare_params. nout: real output dim."""
    global _SINGLE_BUFFER_WEIGHTS_OK
    flat_params = tuple(flat_params)
    if nout is None:
        nout = int(flat_params[-1].shape[-1])

    if _SINGLE_BUFFER_WEIGHTS_OK is None:
        if not hasattr(pl, "Buffered"):
            _SINGLE_BUFFER_WEIGHTS_OK = False
        else:
            try:
                out = _mlp_forward_impl(x, flat_params, nout, batch_tile, True)
                _SINGLE_BUFFER_WEIGHTS_OK = True
                return out
            except Exception:
                # Fallback: default double-buffering of the (tiny) weights.
                _SINGLE_BUFFER_WEIGHTS_OK = False
    return _mlp_forward_impl(x, flat_params, nout, batch_tile,
                             bool(_SINGLE_BUFFER_WEIGHTS_OK))


# ---------------------------------------------------------------------------
# Reference + init (nn.Linear-style).
# ---------------------------------------------------------------------------
def init_mlp_params(key, nin, nout, nh):
    """nn.Linear-style init: U(-1/sqrt(fan_in), 1/sqrt(fan_in)).
    Weights stored as (in, out) so the kernel computes x @ W + b."""
    dims = [(nin, nh), (nh, nh), (nh, nh), (nh, nh), (nh, nh), (nh, nout)]
    params = []
    for (fan_in, fan_out) in dims:
        key, kw, kb = jax.random.split(key, 3)
        bound = 1.0 / (fan_in ** 0.5)
        w = jax.random.uniform(kw, (fan_in, fan_out), jnp.float32, -bound, bound)
        b = jax.random.uniform(kb, (1, fan_out), jnp.float32, -bound, bound)
        params.append((w, b))
    return params


def mlp_reference(x, params):
    h = x
    for i, (w, b) in enumerate(params):
        h = h @ w + b
        if i < len(params) - 1:
            h = jnp.where(h > 0, h, 0.2 * h)
    return h


if __name__ == "__main__":
    key = jax.random.PRNGKey(0)
    B, nin, nh, nout = 8, 16, 32, 16

    key, kx = jax.random.split(key)
    x = jax.random.normal(kx, (B, nin), jnp.float32)
    params = init_mlp_params(key, nin, nout, nh)
    ref = mlp_reference(x, params)

    # f32 MXU operands — tight numerical check.
    fp32_params = prepare_params(params, compute_dtype=jnp.float32)
    out = jax.block_until_ready(mlp_forward(x, fp32_params, nout))
    assert out.shape == (B, nout)
    assert jnp.allclose(out, ref, atol=1e-4, rtol=1e-4)

    # bf16 MXU operands (recommended default on v5e/v6e/v7x) — looser tolerance.
    bf16_params = prepare_params(params, compute_dtype=jnp.bfloat16)
    out_bf16 = jax.block_until_ready(mlp_forward(x, bf16_params, nout))
    assert out_bf16.shape == (B, nout)
    assert jnp.allclose(out_bf16, ref, atol=1e-1, rtol=1e-1)

    # Non-multiple batch exercises the partial-last-block path and a 2-step grid.
    x2 = jax.random.normal(jax.random.PRNGKey(1), (300, nin), jnp.float32)
    out2 = jax.block_until_ready(mlp_forward(x2, bf16_params, nout))
    assert out2.shape == (300, nout)
    assert jnp.allclose(out2, mlp_reference(x2, params), atol=1e-1, rtol=1e-1)

    print("KERNEL_OK")
</pallas_src>

<mosaic_0001>
module attributes {stable_mosaic.version = 11 : i64} {
  func.func @mlp_kernel(%arg0: i32, %arg1: memref<8x16xf32, #tpu.memory_space<vmem>>, %arg2: memref<16x128xf32, #tpu.memory_space<vmem>>, %arg3: memref<1x128xf32, #tpu.memory_space<vmem>>, %arg4: memref<128x128xf32, #tpu.memory_space<vmem>>, %arg5: memref<1x128xf32, #tpu.memory_space<vmem>>, %arg6: memref<128x128xf32, #tpu.memory_space<vmem>>, %arg7: memref<1x128xf32, #tpu.memory_space<vmem>>, %arg8: memref<128x128xf32, #tpu.memory_space<vmem>>, %arg9: memref<1x128xf32, #tpu.memory_space<vmem>>, %arg10: memref<128x128xf32, #tpu.memory_space<vmem>>, %arg11: memref<1x128xf32, #tpu.memory_space<vmem>>, %arg12: memref<128x128xf32, #tpu.memory_space<vmem>>, %arg13: memref<1x128xf32, #tpu.memory_space<vmem>>, %arg14: memref<8x128xf32, #tpu.memory_space<vmem>>) attributes {dimension_semantics = [#tpu.dimension_semantics<parallel>], iteration_bounds = array<i64: 1>, scalar_prefetch = 0 : i64, scratch_operands = 0 : i64, tpu.core_type = #tpu.core_type<tc>, window_params = [{transform_indices = @transform_0, window_bounds = array<i64: 8, 16>}, {pipeline_mode = #tpu.pipeline_mode<synchronous>, transform_indices = @transform_1, window_bounds = array<i64: 16, 128>}, {pipeline_mode = #tpu.pipeline_mode<synchronous>, transform_indices = @transform_2, window_bounds = array<i64: 1, 128>}, {pipeline_mode = #tpu.pipeline_mode<synchronous>, transform_indices = @transform_3, window_bounds = array<i64: 128, 128>}, {pipeline_mode = #tpu.pipeline_mode<synchronous>, transform_indices = @transform_4, window_bounds = array<i64: 1, 128>}, {pipeline_mode = #tpu.pipeline_mode<synchronous>, transform_indices = @transform_5, window_bounds = array<i64: 128, 128>}, {pipeline_mode = #tpu.pipeline_mode<synchronous>, transform_indices = @transform_6, window_bounds = array<i64: 1, 128>}, {pipeline_mode = #tpu.pipeline_mode<synchronous>, transform_indices = @transform_7, window_bounds = array<i64: 128, 128>}, {pipeline_mode = #tpu.pipeline_mode<synchronous>, transform_indices = @transform_8, window_bounds = array<i64: 1, 128>}, {pipeline_mode = #tpu.pipeline_mode<synchronous>, transform_indices = @transform_9, window_bounds = array<i64: 128, 128>}, {pipeline_mode = #tpu.pipeline_mode<synchronous>, transform_indices = @transform_10, window_bounds = array<i64: 1, 128>}, {pipeline_mode = #tpu.pipeline_mode<synchronous>, transform_indices = @transform_11, window_bounds = array<i64: 128, 128>}, {pipeline_mode = #tpu.pipeline_mode<synchronous>, transform_indices = @transform_12, window_bounds = array<i64: 1, 128>}, {transform_indices = @transform_13, window_bounds = array<i64: 8, 128>}]} {
    %c0 = arith.constant 0 : index
    %c0_0 = arith.constant 0 : index
    %0 = vector.load %arg1[%c0, %c0_0] : memref<8x16xf32, #tpu.memory_space<vmem>>, vector<8x16xf32>
    %c0_1 = arith.constant 0 : index
    %c0_2 = arith.constant 0 : index
    %1 = vector.load %arg2[%c0_1, %c0_2] : memref<16x128xf32, #tpu.memory_space<vmem>>, vector<16x128xf32>
    %c0_3 = arith.constant 0 : index
    %c0_4 = arith.constant 0 : index
    %2 = vector.load %arg3[%c0_3, %c0_4] : memref<1x128xf32, #tpu.memory_space<vmem>>, vector<1x128xf32>
    %cst = arith.constant dense<0.000000e+00> : vector<8x128xf32>
    %3 = tpu.matmul %0, %1, %cst {dimension_numbers = #tpu.dot_dimension_numbers<[1], [0], [0], [1], [0, 0, 1, 1], [], []>} : vector<8x16xf32>, vector<16x128xf32>, vector<8x128xf32> -> vector<8x128xf32>
    %4 = vector.broadcast %2 : vector<1x128xf32> to vector<8x128xf32>
    %5 = arith.addf %3, %4 : vector<8x128xf32>
    %cst_5 = arith.constant 2.000000e-01 : f32
    %6 = vector.broadcast %cst_5 : f32 to vector<8x128xf32>
    %7 = arith.mulf %6, %5 : vector<8x128xf32>
    %8 = arith.maximumf %5, %7 : vector<8x128xf32>
    %c0_6 = arith.constant 0 : index
    %c0_7 = arith.constant 0 : index
    %9 = vector.load %arg4[%c0_6, %c0_7] : memref<128x128xf32, #tpu.memory_space<vmem>>, vector<128x128xf32>
    %c0_8 = arith.constant 0 : index
    %c0_9 = arith.constant 0 : index
    %10 = vector.load %arg5[%c0_8, %c0_9] : memref<1x128xf32, #tpu.memory_space<vmem>>, vector<1x128xf32>
    %cst_10 = arith.constant dense<0.000000e+00> : vector<8x128xf32>
    %11 = tpu.matmul %8, %9, %cst_10 {dimension_numbers = #tpu.dot_dimension_numbers<[1], [0], [0], [1], [0, 0, 1, 1], [], []>} : vector<8x128xf32>, vector<128x128xf32>, vector<8x128xf32> -> vector<8x128xf32>
    %12 = vector.broadcast %10 : vector<1x128xf32> to vector<8x128xf32>
    %13 = arith.addf %11, %12 : vector<8x128xf32>
    %cst_11 = arith.constant 2.000000e-01 : f32
    %14 = vector.broadcast %cst_11 : f32 to vector<8x128xf32>
    %15 = arith.mulf %14, %13 : vector<8x128xf32>
    %16 = arith.maximumf %13, %15 : vector<8x128xf32>
    %c0_12 = arith.constant 0 : index
    %c0_13 = arith.constant 0 : index
    %17 = vector.load %arg6[%c0_12, %c0_13] : memref<128x128xf32, #tpu.memory_space<vmem>>, vector<128x128xf32>
    %c0_14 = arith.constant 0 : index
    %c0_15 = arith.constant 0 : index
    %18 = vector.load %arg7[%c0_14, %c0_15] : memref<1x128xf32, #tpu.memory_space<vmem>>, vector<1x128xf32>
    %cst_16 = arith.constant dense<0.000000e+00> : vector<8x128xf32>
    %19 = tpu.matmul %16, %17, %cst_16 {dimension_numbers = #tpu.dot_dimension_numbers<[1], [0], [0], [1], [0, 0, 1, 1], [], []>} : vector<8x128xf32>, vector<128x128xf32>, vector<8x128xf32> -> vector<8x128xf32>
    %20 = vector.broadcast %18 : vector<1x128xf32> to vector<8x128xf32>
    %21 = arith.addf %19, %20 : vector<8x128xf32>
    %cst_17 = arith.constant 2.000000e-01 : f32
    %22 = vector.broadcast %cst_17 : f32 to vector<8x128xf32>
    %23 = arith.mulf %22, %21 : vector<8x128xf32>
    %24 = arith.maximumf %21, %23 : vector<8x128xf32>
    %c0_18 = arith.constant 0 : index
    %c0_19 = arith.constant 0 : index
    %25 = vector.load %arg8[%c0_18, %c0_19] : memref<128x128xf32, #tpu.memory_space<vmem>>, vector<128x128xf32>
    %c0_20 = arith.constant 0 : index
    %c0_21 = arith.constant 0 : index
    %26 = vector.load %arg9[%c0_20, %c0_21] : memref<1x128xf32, #tpu.memory_space<vmem>>, vector<1x128xf32>
    %cst_22 = arith.constant dense<0.000000e+00> : vector<8x128xf32>
    %27 = tpu.matmul %24, %25, %cst_22 {dimension_numbers = #tpu.dot_dimension_numbers<[1], [0], [0], [1], [0, 0, 1, 1], [], []>} : vector<8x128xf32>, vector<128x128xf32>, vector<8x128xf32> -> vector<8x128xf32>
    %28 = vector.broadcast %26 : vector<1x128xf32> to vector<8x128xf32>
    %29 = arith.addf %27, %28 : vector<8x128xf32>
    %cst_23 = arith.constant 2.000000e-01 : f32
    %30 = vector.broadcast %cst_23 : f32 to vector<8x128xf32>
    %31 = arith.mulf %30, %29 : vector<8x128xf32>
    %32 = arith.maximumf %29, %31 : vector<8x128xf32>
    %c0_24 = arith.constant 0 : index
    %c0_25 = arith.constant 0 : index
    %33 = vector.load %arg10[%c0_24, %c0_25] : memref<128x128xf32, #tpu.memory_space<vmem>>, vector<128x128xf32>
    %c0_26 = arith.constant 0 : index
    %c0_27 = arith.constant 0 : index
    %34 = vector.load %arg11[%c0_26, %c0_27] : memref<1x128xf32, #tpu.memory_space<vmem>>, vector<1x128xf32>
    %cst_28 = arith.constant dense<0.000000e+00> : vector<8x128xf32>
    %35 = tpu.matmul %32, %33, %cst_28 {dimension_numbers = #tpu.dot_dimension_numbers<[1], [0], [0], [1], [0, 0, 1, 1], [], []>} : vector<8x128xf32>, vector<128x128xf32>, vector<8x128xf32> -> vector<8x128xf32>
    %36 = vector.broadcast %34 : vector<1x128xf32> to vector<8x128xf32>
    %37 = arith.addf %35, %36 : vector<8x128xf32>
    %cst_29 = arith.constant 2.000000e-01 : f32
    %38 = vector.broadcast %cst_29 : f32 to vector<8x128xf32>
    %39 = arith.mulf %38, %37 : vector<8x128xf32>
    %40 = arith.maximumf %37, %39 : vector<8x128xf32>
    %c0_30 = arith.constant 0 : index
    %c0_31 = arith.constant 0 : index
    %41 = vector.load %arg12[%c0_30, %c0_31] : memref<128x128xf32, #tpu.memory_space<vmem>>, vector<128x128xf32>
    %c0_32 = arith.constant 0 : index
    %c0_33 = arith.constant 0 : index
    %42 = vector.load %arg13[%c0_32, %c0_33] : memref<1x128xf32, #tpu.memory_space<vmem>>, vector<1x128xf32>
    %cst_34 = arith.constant dense<0.000000e+00> : vector<8x128xf32>
    %43 = tpu.matmul %40, %41, %cst_34 {dimension_numbers = #tpu.dot_dimension_numbers<[1], [0], [0], [1], [0, 0, 1, 1], [], []>} : vector<8x128xf32>, vector<128x128xf32>, vector<8x128xf32> -> vector<8x128xf32>
    %44 = vector.broadcast %42 : vector<1x128xf32> to vector<8x128xf32>
    %45 = arith.addf %43, %44 : vector<8x128xf32>
    %c0_35 = arith.constant 0 : index
    %c0_36 = arith.constant 0 : index
    %46 = vector.load %arg14[%c0_35, %c0_36] : memref<8x128xf32, #tpu.memory_space<vmem>>, vector<8x128xf32>
    tpu.vector_store %arg14[%c0_35, %c0_36], %45 {strides = array<i32>} : memref<8x128xf32, #tpu.memory_space<vmem>>, vector<8x128xf32>,
    return
  }
  func.func @transform_0(%arg0: i32) -> (i32, i32) {
    %c0_i32 = arith.constant 0 : i32
    %c0_i32_0 = arith.constant 0 : i32
    return %arg0, %c0_i32 : i32, i32
  }
  func.func @transform_1(%arg0: i32) -> (i32, i32) {
    %c0_i32 = arith.constant 0 : i32
    %c0_i32_0 = arith.constant 0 : i32
    %c0_i32_1 = arith.constant 0 : i32
    return %c0_i32, %c0_i32_0 : i32, i32
  }
  func.func @transform_2(%arg0: i32) -> (i32, i32) {
    %c0_i32 = arith.constant 0 : i32
    %c0_i32_0 = arith.constant 0 : i32
    %c0_i32_1 = arith.constant 0 : i32
    return %c0_i32, %c0_i32_0 : i32, i32
  }
  func.func @transform_3(%arg0: i32) -> (i32, i32) {
    %c0_i32 = arith.constant 0 : i32
    %c0_i32_0 = arith.constant 0 : i32
    %c0_i32_1 = arith.constant 0 : i32
    return %c0_i32, %c0_i32_0 : i32, i32
  }
  func.func @transform_4(%arg0: i32) -> (i32, i32) {
    %c0_i32 = arith.constant 0 : i32
    %c0_i32_0 = arith.constant 0 : i32
    %c0_i32_1 = arith.constant 0 : i32
    return %c0_i32, %c0_i32_0 : i32, i32
  }
  func.func @transform_5(%arg0: i32) -> (i32, i32) {
    %c0_i32 = arith.constant 0 : i32
    %c0_i32_0 = arith.constant 0 : i32
    %c0_i32_1 = arith.constant 0 : i32
    return %c0_i32, %c0_i32_0 : i32, i32
  }
  func.func @transform_6(%arg0: i32) -> (i32, i32) {
    %c0_i32 = arith.constant 0 : i32
    %c0_i32_0 = arith.constant 0 : i32
    %c0_i32_1 = arith.constant 0 : i32
    return %c0_i32, %c0_i32_0 : i32, i32
  }
  func.func @transform_7(%arg0: i32) -> (i32, i32) {
    %c0_i32 = arith.constant 0 : i32
    %c0_i32_0 = arith.constant 0 : i32
    %c0_i32_1 = arith.constant 0 : i32
    return %c0_i32, %c0_i32_0 : i32, i32
  }
  func.func @transform_8(%arg0: i32) -> (i32, i32) {
    %c0_i32 = arith.constant 0 : i32
    %c0_i32_0 = arith.constant 0 : i32
    %c0_i32_1 = arith.constant 0 : i32
    return %c0_i32, %c0_i32_0 : i32, i32
  }
  func.func @transform_9(%arg0: i32) -> (i32, i32) {
    %c0_i32 = arith.constant 0 : i32
    %c0_i32_0 = arith.constant 0 : i32
    %c0_i32_1 = arith.constant 0 : i32
    return %c0_i32, %c0_i32_0 : i32, i32
  }
  func.func @transform_10(%arg0: i32) -> (i32, i32) {
    %c0_i32 = arith.constant 0 : i32
    %c0_i32_0 = arith.constant 0 : i32
    %c0_i32_1 = arith.constant 0 : i32
    return %c0_i32, %c0_i32_0 : i32, i32
  }
  func.func @transform_11(%arg0: i32) -> (i32, i32) {
    %c0_i32 = arith.constant 0 : i32
    %c0_i32_0 = arith.constant 0 : i32
    %c0_i32_1 = arith.constant 0 : i32
    return %c0_i32, %c0_i32_0 : i32, i32
  }
  func.func @transform_12(%arg0: i32) -> (i32, i32) {
    %c0_i32 = arith.constant 0 : i32
    %c0_i32_0 = arith.constant 0 : i32
    %c0_i32_1 = arith.constant 0 : i32
    return %c0_i32, %c0_i32_0 : i32, i32
  }
  func.func @transform_13(%arg0: i32) -> (i32, i32) {
    %c0_i32 = arith.constant 0 : i32
    %c0_i32_0 = arith.constant 0 : i32
    return %arg0, %c0_i32 : i32, i32
  }
}

module attributes {stable_mosaic.version = 11 : i64} {
  func.func @mlp_kernel(%arg0: i32, %arg1: memref<8x16xf32, #tpu.memory_space<vmem>>, %arg2: memref<16x128xf32, #tpu.memory_space<vmem>>, %arg3: memref<1x128xf32, #tpu.memory_space<vmem>>, %arg4: memref<128x128xf32, #tpu.memory_space<vmem>>, %arg5: memref<1x128xf32, #tpu.memory_space<vmem>>, %arg6: memref<128x128xf32, #tpu.memory_space<vmem>>, %arg7: memref<1x128xf32, #tpu.memory_space<vmem>>, %arg8: memref<128x128xf32, #tpu.memory_space<vmem>>, %arg9: memref<1x128xf32, #tpu.memory_space<vmem>>, %arg10: memref<128x128xf32, #tpu.memory_space<vmem>>, %arg11: memref<1x128xf32, #tpu.memory_space<vmem>>, %arg12: memref<128x128xf32, #tpu.memory_space<vmem>>, %arg13: memref<1x128xf32, #tpu.memory_space<vmem>>, %arg14: memref<8x128xf32, #tpu.memory_space<vmem>>) attributes {dimension_semantics = [#tpu.dimension_semantics<parallel>], iteration_bounds = array<i64: 1>, scalar_prefetch = 0 : i64, scratch_operands = 0 : i64, tpu.core_type = #tpu.core_type<tc>, window_params = [{transform_indices = @transform_0, window_bounds = array<i64: 8, 16>}, {pipeline_mode = #tpu.pipeline_mode<synchronous>, transform_indices = @transform_1, window_bounds = array<i64: 16, 128>}, {pipeline_mode = #tpu.pipeline_mode<synchronous>, transform_indices = @transform_2, window_bounds = array<i64: 1, 128>}, {pipeline_mode = #tpu.pipeline_mode<synchronous>, transform_indices = @transform_3, window_bounds = array<i64: 128, 128>}, {pipeline_mode = #tpu.pipeline_mode<synchronous>, transform_indices = @transform_4, window_bounds = array<i64: 1, 128>}, {pipeline_mode = #tpu.pipeline_mode<synchronous>, transform_indices = @transform_5, window_bounds = array<i64: 128, 128>}, {pipeline_mode = #tpu.pipeline_mode<synchronous>, transform_indices = @transform_6, window_bounds = array<i64: 1, 128>}, {pipeline_mode = #tpu.pipeline_mode<synchronous>, transform_indices = @transform_7, window_bounds = array<i64: 128, 128>}, {pipeline_mode = #tpu.pipeline_mode<synchronous>, transform_indices = @transform_8, window_bounds = array<i64: 1, 128>}, {pipeline_mode = #tpu.pipeline_mode<synchronous>, transform_indices = @transform_9, window_bounds = array<i64: 128, 128>}, {pipeline_mode = #tpu.pipeline_mode<synchronous>, transform_indices = @transform_10, window_bounds = array<i64: 1, 128>}, {pipeline_mode = #tpu.pipeline_mode<synchronous>, transform_indices = @transform_11, window_bounds = array<i64: 128, 128>}, {pipeline_mode = #tpu.pipeline_mode<synchronous>, transform_indices = @transform_12, window_bounds = array<i64: 1, 128>}, {transform_indices = @transform_13, window_bounds = array<i64: 8, 128>}]} {
    %c0 = arith.constant 0 : index
    %c0_0 = arith.constant 0 : index
    %0 = vector.load %arg1[%c0, %c0_0] : memref<8x16xf32, #tpu.memory_space<vmem>>, vector<8x16xf32>
    %c0_1 = arith.constant 0 : index
    %c0_2 = arith.constant 0 : index
    %1 = vector.load %arg2[%c0_1, %c0_2] : memref<16x128xf32, #tpu.memory_space<vmem>>, vector<16x128xf32>
    %c0_3 = arith.constant 0 : index
    %c0_4 = arith.constant 0 : index
    %2 = vector.load %arg3[%c0_3, %c0_4] : memref<1x128xf32, #tpu.memory_space<vmem>>, vector<1x128xf32>
    %cst = arith.constant dense<0.000000e+00> : vector<8x128xf32>
    %3 = tpu.matmul %0, %1, %cst {dimension_numbers = #tpu.dot_dimension_numbers<[1], [0], [0], [1], [0, 0, 1, 1], [], []>} : vector<8x16xf32>, vector<16x128xf32>, vector<8x128xf32> -> vector<8x128xf32>
    %4 = vector.broadcast %2 : vector<1x128xf32> to vector<8x128xf32>
    %5 = arith.addf %3, %4 : vector<8x128xf32>
    %cst_5 = arith.constant 2.000000e-01 : f32
    %6 = vector.broadcast %cst_5 : f32 to vector<8x128xf32>
    %7 = arith.mulf %6, %5 : vector<8x128xf32>
    %8 = arith.maximumf %5, %7 : vector<8x128xf32>
    %c0_6 = arith.constant 0 : index
    %c0_7 = arith.constant 0 : index
    %9 = vector.load %arg4[%c0_6, %c0_7] : memref<128x128xf32, #tpu.memory_space<vmem>>, vector<128x128xf32>
    %c0_8 = arith.constant 0 : index
    %c0_9 = arith.constant 0 : index
    %10 = vector.load %arg5[%c0_8, %c0_9] : memref<1x128xf32, #tpu.memory_space<vmem>>, vector<1x128xf32>
    %cst_10 = arith.constant dense<0.000000e+00> : vector<8x128xf32>
    %11 = tpu.matmul %8, %9, %cst_10 {dimension_numbers = #tpu.dot_dimension_numbers<[1], [0], [0], [1], [0, 0, 1, 1], [], []>} : vector<8x128xf32>, vector<128x128xf32>, vector<8x128xf32> -> vector<8x128xf32>
    %12 = vector.broadcast %10 : vector<1x128xf32> to vector<8x128xf32>
    %13 = arith.addf %11, %12 : vector<8x128xf32>
    %cst_11 = arith.constant 2.000000e-01 : f32
    %14 = vector.broadcast %cst_11 : f32 to vector<8x128xf32>
    %15 = arith.mulf %14, %13 : vector<8x128xf32>
    %16 = arith.maximumf %13, %15 : vector<8x128xf32>
    %c0_12 = arith.constant 0 : index
    %c0_13 = arith.constant 0 : index
    %17 = vector.load %arg6[%c0_12, %c0_13] : memref<128x128xf32, #tpu.memory_space<vmem>>, vector<128x128xf32>
    %c0_14 = arith.constant 0 : index
    %c0_15 = arith.constant 0 : index
    %18 = vector.load %arg7[%c0_14, %c0_15] : memref<1x128xf32, #tpu.memory_space<vmem>>, vector<1x128xf32>
    %cst_16 = arith.constant dense<0.000000e+00> : vector<8x128xf32>
    %19 = tpu.matmul %16, %17, %cst_16 {dimension_numbers = #tpu.dot_dimension_numbers<[1], [0], [0], [1], [0, 0, 1, 1], [], []>} : vector<8x128xf32>, vector<128x128xf32>, vector<8x128xf32> -> vector<8x128xf32>
    %20 = vector.broadcast %18 : vector<1x128xf32> to vector<8x128xf32>
    %21 = arith.addf %19, %20 : vector<8x128xf32>
    %cst_17 = arith.constant 2.000000e-01 : f32
    %22 = vector.broadcast %cst_17 : f32 to vector<8x128xf32>
    %23 = arith.mulf %22, %21 : vector<8x128xf32>
    %24 = arith.maximumf %21, %23 : vector<8x128xf32>
    %c0_18 = arith.constant 0 : index
    %c0_19 = arith.constant 0 : index
    %25 = vector.load %arg8[%c0_18, %c0_19] : memref<128x128xf32, #tpu.memory_space<vmem>>, vector<128x128xf32>
    %c0_20 = arith.constant 0 : index
    %c0_21 = arith.constant 0 : index
    %26 = vector.load %arg9[%c0_20, %c0_21] : memref<1x128xf32, #tpu.memory_space<vmem>>, vector<1x128xf32>
    %cst_22 = arith.constant dense<0.000000e+00> : vector<8x128xf32>
    %27 = tpu.matmul %24, %25, %cst_22 {dimension_numbers = #tpu.dot_dimension_numbers<[1], [0], [0], [1], [0, 0, 1, 1], [], []>} : vector<8x128xf32>, vector<128x128xf32>, vector<8x128xf32> -> vector<8x128xf32>
    %28 = vector.broadcast %26 : vector<1x128xf32> to vector<8x128xf32>
    %29 = arith.addf %27, %28 : vector<8x128xf32>
    %cst_23 = arith.constant 2.000000e-01 : f32
    %30 = vector.broadcast %cst_23 : f32 to vector<8x128xf32>
    %31 = arith.mulf %30, %29 : vector<8x128xf32>
    %32 = arith.maximumf %29, %31 : vector<8x128xf32>
    %c0_24 = arith.constant 0 : index
    %c0_25 = arith.constant 0 : index
    %33 = vector.load %arg10[%c0_24, %c0_25] : memref<128x128xf32, #tpu.memory_space<vmem>>, vector<128x128xf32>
    %c0_26 = arith.constant 0 : index
    %c0_27 = arith.constant 0 : index
    %34 = vector.load %arg11[%c0_26, %c0_27] : memref<1x128xf32, #tpu.memory_space<vmem>>, vector<1x128xf32>
    %cst_28 = arith.constant dense<0.000000e+00> : vector<8x128xf32>
    %35 = tpu.matmul %32, %33, %cst_28 {dimension_numbers = #tpu.dot_dimension_numbers<[1], [0], [0], [1], [0, 0, 1, 1], [], []>} : vector<8x128xf32>, vector<128x128xf32>, vector<8x128xf32> -> vector<8x128xf32>
    %36 = vector.broadcast %34 : vector<1x128xf32> to vector<8x128xf32>
    %37 = arith.addf %35, %36 : vector<8x128xf32>
    %cst_29 = arith.constant 2.000000e-01 : f32
    %38 = vector.broadcast %cst_29 : f32 to vector<8x128xf32>
    %39 = arith.mulf %38, %37 : vector<8x128xf32>
    %40 = arith.maximumf %37, %39 : vector<8x128xf32>
    %c0_30 = arith.constant 0 : index
    %c0_31 = arith.constant 0 : index
    %41 = vector.load %arg12[%c0_30, %c0_31] : memref<128x128xf32, #tpu.memory_space<vmem>>, vector<128x128xf32>
    %c0_32 = arith.constant 0 : index
    %c0_33 = arith.constant 0 : index
    %42 = vector.load %arg13[%c0_32, %c0_33] : memref<1x128xf32, #tpu.memory_space<vmem>>, vector<1x128xf32>
    %cst_34 = arith.constant dense<0.000000e+00> : vector<8x128xf32>
    %43 = tpu.matmul %40, %41, %cst_34 {dimension_numbers = #tpu.dot_dimension_numbers<[1], [0], [0], [1], [0, 0, 1, 1], [], []>} : vector<8x128xf32>, vector<128x128xf32>, vector<8x128xf32> -> vector<8x128xf32>
    %44 = vector.broadcast %42 : vector<1x128xf32> to vector<8x128xf32>
    %45 = arith.addf %43, %44 : vector<8x128xf32>
    %c0_35 = arith.constant 0 : index
    %c0_36 = arith.constant 0 : index
    %46 = vector.load %arg14[%c0_35, %c0_36] : memref<8x128xf32, #tpu.memory_space<vmem>>, vector<8x128xf32>
    tpu.vector_store %arg14[%c0_35, %c0_36], %45 {strides = array<i32>} : memref<8x128xf32, #tpu.memory_space<vmem>>, vector<8x128xf32>,
    return
  }
  func.func @transform_0(%arg0: i32) -> (i32, i32) {
    %c0_i32 = arith.constant 0 : i32
    %c0_i32_0 = arith.constant 0 : i32
    return %arg0, %c0_i32 : i32, i32
  }
  func.func @transform_1(%arg0: i32) -> (i32, i32) {
    %c0_i32 = arith.constant 0 : i32
    %c0_i32_0 = arith.constant 0 : i32
    %c0_i32_1 = arith.constant 0 : i32
    return %c0_i32, %c0_i32_0 : i32, i32
  }
  func.func @transform_2(%arg0: i32) -> (i32, i32) {
    %c0_i32 = arith.constant 0 : i32
    %c0_i32_0 = arith.constant 0 : i32
    %c0_i32_1 = arith.constant 0 : i32
    return %c0_i32, %c0_i32_0 : i32, i32
  }
  func.func @transform_3(%arg0: i32) -> (i32, i32) {
    %c0_i32 = arith.constant 0 : i32
    %c0_i32_0 = arith.constant 0 : i32
    %c0_i32_1 = arith.constant 0 : i32
    return %c0_i32, %c0_i32_0 : i32, i32
  }
  func.func @transform_4(%arg0: i32) -> (i32, i32) {
    %c0_i32 = arith.constant 0 : i32
    %c0_i32_0 = arith.constant 0 : i32
    %c0_i32_1 = arith.constant 0 : i32
    return %c0_i32, %c0_i32_0 : i32, i32
  }
  func.func @transform_5(%arg0: i32) -> (i32, i32) {
    %c0_i32 = arith.constant 0 : i32
    %c0_i32_0 = arith.constant 0 : i32
    %c0_i32_1 = arith.constant 0 : i32
    return %c0_i32, %c0_i32_0 : i32, i32
  }
  func.func @transform_6(%arg0: i32) -> (i32, i32) {
    %c0_i32 = arith.constant 0 : i32
    %c0_i32_0 = arith.constant 0 : i32
    %c0_i32_1 = arith.constant 0 : i32
    return %c0_i32, %c0_i32_0 : i32, i32
  }
  func.func @transform_7(%arg0: i32) -> (i32, i32) {
    %c0_i32 = arith.constant 0 : i32
    %c0_i32_0 = arith.constant 0 : i32
    %c0_i32_1 = arith.constant 0 : i32
    return %c0_i32, %c0_i32_0 : i32, i32
  }
  func.func @transform_8(%arg0: i32) -> (i32, i32) {
    %c0_i32 = arith.constant 0 : i32
    %c0_i32_0 = arith.constant 0 : i32
    %c0_i32_1 = arith.constant 0 : i32
    return %c0_i32, %c0_i32_0 : i32, i32
  }
  func.func @transform_9(%arg0: i32) -> (i32, i32) {
    %c0_i32 = arith.constant 0 : i32
    %c0_i32_0 = arith.constant 0 : i32
    %c0_i32_1 = arith.constant 0 : i32
    return %c0_i32, %c0_i32_0 : i32, i32
  }
  func.func @transform_10(%arg0: i32) -> (i32, i32) {
    %c0_i32 = arith.constant 0 : i32
    %c0_i32_0 = arith.constant 0 : i32
    %c0_i32_1 = arith.constant 0 : i32
    return %c0_i32, %c0_i32_0 : i32, i32
  }
  func.func @transform_11(%arg0: i32) -> (i32, i32) {
    %c0_i32 = arith.constant 0 : i32
    %c0_i32_0 = arith.constant 0 : i32
    %c0_i32_1 = arith.constant 0 : i32
    return %c0_i32, %c0_i32_0 : i32, i32
  }
  func.func @transform_12(%arg0: i32) -> (i32, i32) {
    %c0_i32 = arith.constant 0 : i32
    %c0_i32_0 = arith.constant 0 : i32
    %c0_i32_1 = arith.constant 0 : i32
    return %c0_i32, %c0_i32_0 : i32, i32
  }
  func.func @transform_13(%arg0: i32) -> (i32, i32) {
    %c0_i32 = arith.constant 0 : i32
    %c0_i32_0 = arith.constant 0 : i32
    return %arg0, %c0_i32 : i32, i32
  }
}

</mosaic_0001>

<llo_original>
// kernel: _mlp_forward_impl.1
$region0: #{_mlp_forward_impl.1}
  #allocation0 [shape = 'u32[]', space=smem, size = 0x4, offset = 0x4, fixed_abs, tag = 'smem constant byte address 0x4 - core index']
  #allocation1 [shape = 'u32[72,128]{1,0:T(1,128)}', space=vmem, size = 0x9000, scoped, tag = 'internal scratch']
  %s0 = inlined_call_operand.hbm [shape: f32[8,16], index: 0, kind: input, shape index: {}]
  %s1 = inlined_call_operand.hbm [shape: f32[16,128], index: 1, kind: input, shape index: {}]
  %s2 = inlined_call_operand.vmem [shape: f32[1,128], index: 2, kind: input, shape index: {}]
  %s3 = inlined_call_operand.hbm [shape: f32[128,128], index: 3, kind: input, shape index: {}]
  %s4 = inlined_call_operand.vmem [shape: f32[1,128], index: 4, kind: input, shape index: {}]
  %s5 = inlined_call_operand.hbm [shape: f32[128,128], index: 5, kind: input, shape index: {}]
  %s6 = inlined_call_operand.vmem [shape: f32[1,128], index: 6, kind: input, shape index: {}]
  %s7 = inlined_call_operand.hbm [shape: f32[128,128], index: 7, kind: input, shape index: {}]
  %s8 = inlined_call_operand.vmem [shape: f32[1,128], index: 8, kind: input, shape index: {}]
  %s9 = inlined_call_operand.hbm [shape: f32[128,128], index: 9, kind: input, shape index: {}]
  %s10 = inlined_call_operand.vmem [shape: f32[1,128], index: 10, kind: input, shape index: {}]
  %s11 = inlined_call_operand.hbm [shape: f32[128,128], index: 11, kind: input, shape index: {}]
  %s12 = inlined_call_operand.vmem [shape: f32[1,128], index: 12, kind: input, shape index: {}]
  %s13 = inlined_call_operand.hbm [shape: f32[8,128], index: 13, kind: output, shape index: {}]
  %s14 = sld [smem:[#allocation0]]
  $region90: #{_mlp_forward_impl.1} parent=0
    _
  %s16 = ssub.s32 1, %s14
  %s17 = scalar_select 0, %s16, %s14
  $region1: #{_mlp_forward_impl.1} parent=0
    #allocation2 [shape = 'u8[4096]{0}', space=vmem, size = 0x1000, scoped, tag = 'input window, operand 0, single buffered']
    #allocation3 [shape = 's32[1]{0}', space=sflag, size = 0x4, scoped, tag = 'scoped memory for _mlp_forward_impl.1']
    #allocation4 [shape = 's32[1]{0}', space=sflag, size = 0x4, scoped, tag = 'scoped memory for _mlp_forward_impl.1']
    #allocation5 [shape = 'u8[8192]{0}', space=vmem, size = 0x2000, scoped, tag = 'input window, operand 1, single buffered']
    #allocation6 [shape = 's32[1]{0}', space=sflag, size = 0x4, scoped, tag = 'scoped memory for _mlp_forward_impl.1']
    #allocation7 [shape = 'u8[65536]{0}', space=vmem, size = 0x10000, scoped, tag = 'input window, operand 3, single buffered']
    #allocation8 [shape = 'u8[65536]{0}', space=vmem, size = 0x10000, scoped, tag = 'input window, operand 5, single buffered']
    #allocation9 [shape = 's32[1]{0}', space=sflag, size = 0x4, scoped, tag = 'scoped memory for _mlp_forward_impl.1']
    #allocation10 [shape = 'u8[65536]{0}', space=vmem, size = 0x10000, scoped, tag = 'input window, operand 7, single buffered']
    #allocation11 [shape = 'u8[65536]{0}', space=vmem, size = 0x10000, scoped, tag = 'input window, operand 9, single buffered']
    #allocation12 [shape = 's32[1]{0}', space=sflag, size = 0x4, scoped, tag = 'scoped memory for _mlp_forward_impl.1']
    #allocation13 [shape = 'u8[65536]{0}', space=vmem, size = 0x10000, scoped, tag = 'input window, operand 11, single buffered']
    #allocation14 [shape = 'u8[4096]{0}', space=vmem, size = 0x1000, scoped, tag = 'output window, operand 0, single buffered']
    %18 = vsyncpa [#allocation3], 0
    %19 = vsyncpa [#allocation6], 0
    %20 = vsyncpa [#allocation9], 0
    %21 = vsyncpa [#allocation12], 0
    %22 = vsyncpa [#allocation4], 0
    // Predicated region
    $region2: #{_mlp_forward_impl.1} parent=1 // pred_check
      _
    $region3: #{_mlp_forward_impl.1} parent=1 // pred_check_branch
      %24 = sbr.rel (0) target = $region5
    $region4: #{_mlp_forward_impl.1} parent=1 // pred_region
      %26 = vsyncadd [#allocation3], 0
      %s28 = sshll.u32 %s0, 4
      %s29 = int_to_ptr.hbm [resolvable:$true] %s28
      %s30 = sshll.u32 [#allocation2], 4
      %s31 = int_to_ptr.vmem [resolvable:$true] %s30
      %33 = dma.hbm_to_vmem [thread:$0]  %s29, 128, %s31, [#allocation3]
    $region5: #{_mlp_forward_impl.1} parent=1 // pred_fallthru
      _
    // Predicated region
    $region6: #{_mlp_forward_impl.1} parent=1 // pred_check
      _
    $region7: #{_mlp_forward_impl.1} parent=1 // pred_check_branch
      %35 = sbr.rel (0) target = $region9
    $region8: #{_mlp_forward_impl.1} parent=1 // pred_region
      %37 = vsyncadd [#allocation6], 0
      %s38 = sshll.u32 %s1, 4
      %s39 = int_to_ptr.hbm [resolvable:$true] %s38
      %s40 = sshll.u32 [#allocation5], 4
      %s41 = int_to_ptr.vmem [resolvable:$true] %s40
      %46 = dma.hbm_to_vmem [thread:$0]  %s39, 256, %s41, [#allocation6], 128, 128, 8
    $region9: #{_mlp_forward_impl.1} parent=1 // pred_fallthru
      _
    // Predicated region
    $region10: #{_mlp_forward_impl.1} parent=1 // pred_check
      _
    $region11: #{_mlp_forward_impl.1} parent=1 // pred_check_branch
      %48 = sbr.rel (0) target = $region13
    $region12: #{_mlp_forward_impl.1} parent=1 // pred_region
      _
    $region13: #{_mlp_forward_impl.1} parent=1 // pred_fallthru
      _
    // Predicated region
    $region14: #{_mlp_forward_impl.1} parent=1 // pred_check
      _
    $region15: #{_mlp_forward_impl.1} parent=1 // pred_check_branch
      %50 = sbr.rel (0) target = $region17
    $region16: #{_mlp_forward_impl.1} parent=1 // pred_region
      %52 = vsyncadd [#allocation6], 0
      %s53 = sshll.u32 %s3, 4
      %s54 = int_to_ptr.hbm [resolvable:$true] %s53
      %s55 = sshll.u32 [#allocation7], 4
      %s56 = int_to_ptr.vmem [resolvable:$true] %s55
      %61 = dma.hbm_to_vmem [thread:$0]  %s54, 2048, %s56, [#allocation6], 128, 128, 8
    $region17: #{_mlp_forward_impl.1} parent=1 // pred_fallthru
      _
    // Predicated region
    $region18: #{_mlp_forward_impl.1} parent=1 // pred_check
      _
    $region19: #{_mlp_forward_impl.1} parent=1 // pred_check_branch
      %63 = sbr.rel (0) target = $region21
    $region20: #{_mlp_forward_impl.1} parent=1 // pred_region
      _
    $region21: #{_mlp_forward_impl.1} parent=1 // pred_fallthru
      _
    // Predicated region
    $region22: #{_mlp_forward_impl.1} parent=1 // pred_check
      _
    $region23: #{_mlp_forward_impl.1} parent=1 // pred_check_branch
      %65 = sbr.rel (0) target = $region25
    $region24: #{_mlp_forward_impl.1} parent=1 // pred_region
      %67 = vsyncadd [#allocation9], 0
      %s68 = sshll.u32 %s5, 4
      %s69 = int_to_ptr.hbm [resolvable:$true] %s68
      %s70 = sshll.u32 [#allocation8], 4
      %s71 = int_to_ptr.vmem [resolvable:$true] %s70
      %76 = dma.hbm_to_vmem [thread:$0]  %s69, 2048, %s71, [#allocation9], 128, 128, 8
    $region25: #{_mlp_forward_impl.1} parent=1 // pred_fallthru
      _
    // Predicated region
    $region26: #{_mlp_forward_impl.1} parent=1 // pred_check
      _
    $region27: #{_mlp_forward_impl.1} parent=1 // pred_check_branch
      %78 = sbr.rel (0) target = $region29
    $region28: #{_mlp_forward_impl.1} parent=1 // pred_region
      _
    $region29: #{_mlp_forward_impl.1} parent=1 // pred_fallthru
      _
    // Predicated region
    $region30: #{_mlp_forward_impl.1} parent=1 // pred_check
      _
    $region31: #{_mlp_forward_impl.1} parent=1 // pred_check_branch
      %80 = sbr.rel (0) target = $region33
    $region32: #{_mlp_forward_impl.1} parent=1 // pred_region
      %82 = vsyncadd [#allocation9], 0
      %s83 = sshll.u32 %s7, 4
      %s84 = int_to_ptr.hbm [resolvable:$true] %s83
      %s85 = sshll.u32 [#allocation10], 4
      %s86 = int_to_ptr.vmem [resolvable:$true] %s85
      %91 = dma.hbm_to_vmem [thread:$0]  %s84, 2048, %s86, [#allocation9], 128, 128, 8
    $region33: #{_mlp_forward_impl.1} parent=1 // pred_fallthru
      _
    // Predicated region
    $region34: #{_mlp_forward_impl.1} parent=1 // pred_check
      _
    $region35: #{_mlp_forward_impl.1} parent=1 // pred_check_branch
      %93 = sbr.rel (0) target = $region37
    $region36: #{_mlp_forward_impl.1} parent=1 // pred_region
      _
    $region37: #{_mlp_forward_impl.1} parent=1 // pred_fallthru
      _
    // Predicated region
    $region38: #{_mlp_forward_impl.1} parent=1 // pred_check
      _
    $region39: #{_mlp_forward_impl.1} parent=1 // pred_check_branch
      %95 = sbr.rel (0) target = $region41
    $region40: #{_mlp_forward_impl.1} parent=1 // pred_region
      %97 = vsyncadd [#allocation12], 0
      %s98 = sshll.u32 %s9, 4
      %s99 = int_to_ptr.hbm [resolvable:$true] %s98
      %s100 = sshll.u32 [#allocation11], 4
      %s101 = int_to_ptr.vmem [resolvable:$true] %s100
      %106 = dma.hbm_to_vmem [thread:$0]  %s99, 2048, %s101, [#allocation12], 128, 128, 8
    $region41: #{_mlp_forward_impl.1} parent=1 // pred_fallthru
      _
    // Predicated region
    $region42: #{_mlp_forward_impl.1} parent=1 // pred_check
      _
    $region43: #{_mlp_forward_impl.1} parent=1 // pred_check_branch
      %108 = sbr.rel (0) target = $region45
    $region44: #{_mlp_forward_impl.1} parent=1 // pred_region
      _
    $region45: #{_mlp_forward_impl.1} parent=1 // pred_fallthru
      _
    // Predicated region
    $region46: #{_mlp_forward_impl.1} parent=1 // pred_check
      _
    $region47: #{_mlp_forward_impl.1} parent=1 // pred_check_branch
      %110 = sbr.rel (0) target = $region49
    $region48: #{_mlp_forward_impl.1} parent=1 // pred_region
      %112 = vsyncadd [#allocation12], 0
      %s113 = sshll.u32 %s11, 4
      %s114 = int_to_ptr.hbm [resolvable:$true] %s113
      %s115 = sshll.u32 [#allocation13], 4
      %s116 = int_to_ptr.vmem [resolvable:$true] %s115
      %121 = dma.hbm_to_vmem [thread:$0]  %s114, 2048, %s116, [#allocation12], 128, 128, 8
    $region49: #{_mlp_forward_impl.1} parent=1 // pred_fallthru
      _
    // Predicated region
    $region50: #{_mlp_forward_impl.1} parent=1 // pred_check
      _
    $region51: #{_mlp_forward_impl.1} parent=1 // pred_check_branch
      %123 = sbr.rel (0) target = $region53
    $region52: #{_mlp_forward_impl.1} parent=1 // pred_region
      _
    $region53: #{_mlp_forward_impl.1} parent=1 // pred_fallthru
      _
    // Predicated region
    $region54: #{_mlp_forward_impl.1} parent=1 // pred_check
      _
    $region55: #{_mlp_forward_impl.1} parent=1 // pred_check_branch
      %125 = sbr.rel (0) target = $region57
    $region56: #{_mlp_forward_impl.1} parent=1 // pred_region
      %127 = dma.done [#allocation3], 128
    $region57: #{_mlp_forward_impl.1} parent=1 // pred_fallthru
      _
    // Predicated region
    $region58: #{_mlp_forward_impl.1} parent=1 // pred_check
      _
    $region59: #{_mlp_forward_impl.1} parent=1 // pred_check_branch
      %129 = sbr.rel (0) target = $region61
    $region60: #{_mlp_forward_impl.1} parent=1 // pred_region
      %131 = dma.done [#allocation6], 256
    $region61: #{_mlp_forward_impl.1} parent=1 // pred_fallthru
      _
    // Predicated region
    $region62: #{_mlp_forward_impl.1} parent=1 // pred_check
      _
    $region63: #{_mlp_forward_impl.1} parent=1 // pred_check_branch
      %133 = sbr.rel (0) target = $region65
    $region64: #{_mlp_forward_impl.1} parent=1 // pred_region
      %135 = dma.done [#allocation6], 2048
    $region65: #{_mlp_forward_impl.1} parent=1 // pred_fallthru
      _
    // Predicated region
    $region66: #{_mlp_forward_impl.1} parent=1 // pred_check
      _
    $region67: #{_mlp_forward_impl.1} parent=1 // pred_check_branch
      %137 = sbr.rel (0) target = $region69
    $region68: #{_mlp_forward_impl.1} parent=1 // pred_region
      %139 = dma.done [#allocation9], 2048
    $region69: #{_mlp_forward_impl.1} parent=1 // pred_fallthru
      _
    // Predicated region
    $region70: #{_mlp_forward_impl.1} parent=1 // pred_check
      _
    $region71: #{_mlp_forward_impl.1} parent=1 // pred_check_branch
      %141 = sbr.rel (0) target = $region73
    $region72: #{_mlp_forward_impl.1} parent=1 // pred_region
      %143 = dma.done [#allocation9], 2048
    $region73: #{_mlp_forward_impl.1} parent=1 // pred_fallthru
      _
    // Predicated region
    $region74: #{_mlp_forward_impl.1} parent=1 // pred_check
      _
    $region75: #{_mlp_forward_impl.1} parent=1 // pred_check_branch
      %145 = sbr.rel (0) target = $region77
    $region76: #{_mlp_forward_impl.1} parent=1 // pred_region
      %147 = dma.done [#allocation12], 2048
    $region77: #{_mlp_forward_impl.1} parent=1 // pred_fallthru
      _
    // Predicated region
    $region78: #{_mlp_forward_impl.1} parent=1 // pred_check
      _
    $region79: #{_mlp_forward_impl.1} parent=1 // pred_check_branch
      %149 = sbr.rel (0) target = $region81
    $region80: #{_mlp_forward_impl.1} parent=1 // pred_region
      %151 = dma.done [#allocation12], 2048
    $region81: #{_mlp_forward_impl.1} parent=1 // pred_fallthru
      _
    %v152 = vld [vmem:[#allocation2] sm:$0xff]
    %v153 = vld [vmem:[#allocation5] sm:$0xff]
    %v154 = vld [vmem:[#allocation5 + $0x8] sm:$0xff]
    %v155 = vld [vmem:[%s2] sm:$0x1]
    %v157 = vperm.slane %v155, 0
    %vm159 = vcmask 130048
    %v161 = vsel %vm159, %v152, 0
    %163 = vmatpush.msra.mxu0 0.0
    %164 = vmatpush.msra.mxu0 0.0
    %165 = vmatpush.msra.mxu0 0.0
    %166 = vmatpush.msra.mxu0 0.0
    %167 = vmatpush.msra.mxu0 0.0
    %168 = vmatpush.msra.mxu0 0.0
    %169 = vmatpush.msra.mxu0 0.0
    %170 = vmatpush.msra.mxu0 0.0
    %171 = vmatpush.msra.mxu0 0.0
    %172 = vmatpush.msra.mxu0 0.0
    %173 = vmatpush.msra.mxu0 0.0
    %174 = vmatpush.msra.mxu0 0.0
    %175 = vmatpush.msra.mxu0 0.0
    %176 = vmatpush.msra.mxu0 0.0
    %177 = vmatpush.msra.mxu0 %v154
    %178 = vmatpush.msra.mxu0 %v153
    %179 = vmatmul.f32.gmra.mxu0 %v161
    %v180 = vpop.f32.mrf.mxu0
    %v181 = vadd.f32 %v157, %v180
    %182 = vdwg.mxu0
    %v183 = vmul.f32 %v181, 0.2
    %v184 = vmax.f32 %v181, %v183
    %v185 = vld [vmem:[#allocation7] sm:$0xff]
    %v186 = vld [vmem:[#allocation7 + $0x8] sm:$0xff]
    %v187 = vld [vmem:[#allocation7 + $0x10] sm:$0xff]
    %v188 = vld [vmem:[#allocation7 + $0x18] sm:$0xff]
    %v189 = vld [vmem:[#allocation7 + $0x20] sm:$0xff]
    %v190 = vld [vmem:[#allocation7 + $0x28] sm:$0xff]
    %v191 = vld [vmem:[#allocation7 + $0x30] sm:$0xff]
    %v192 = vld [vmem:[#allocation7 + $0x38] sm:$0xff]
    %v193 = vld [vmem:[#allocation7 + $0x40] sm:$0xff]
    %v194 = vld [vmem:[#allocation7 + $0x48] sm:$0xff]
    %v195 = vld [vmem:[#allocation7 + $0x50] sm:$0xff]
    %v196 = vld [vmem:[#allocation7 + $0x58] sm:$0xff]
    %v197 = vld [vmem:[#allocation7 + $0x60] sm:$0xff]
    %v198 = vld [vmem:[#allocation7 + $0x68] sm:$0xff]
    %v199 = vld [vmem:[#allocation7 + $0x70] sm:$0xff]
    %v200 = vld [vmem:[#allocation7 + $0x78] sm:$0xff]
    %v201 = vld [vmem:[%s4] sm:$0x1]
    %v203 = vperm.slane %v201, 0
    %205 = vmatpush.msra.mxu0 %v200
    %206 = vmatpush.msra.mxu0 %v199
    %207 = vmatpush.msra.mxu0 %v198
    %208 = vmatpush.msra.mxu0 %v197
    %209 = vmatpush.msra.mxu0 %v196
    %210 = vmatpush.msra.mxu0 %v195
    %211 = vmatpush.msra.mxu0 %v194
    %212 = vmatpush.msra.mxu0 %v193
    %213 = vmatpush.msra.mxu0 %v192
    %214 = vmatpush.msra.mxu0 %v191
    %215 = vmatpush.msra.mxu0 %v190
    %216 = vmatpush.msra.mxu0 %v189
    %217 = vmatpush.msra.mxu0 %v188
    %218 = vmatpush.msra.mxu0 %v187
    %219 = vmatpush.msra.mxu0 %v186
    %220 = vmatpush.msra.mxu0 %v185
    %221 = vmatmul.f32.gmra.mxu0 %v184
    %v222 = vpop.f32.mrf.mxu0
    %v223 = vadd.f32 %v203, %v222
    %224 = vdwg.mxu0
    %v225 = vmul.f32 %v223, 0.2
    %v226 = vmax.f32 %v223, %v225
    %v227 = vld [vmem:[#allocation8] sm:$0xff]
    %v228 = vld [vmem:[#allocation8 + $0x8] sm:$0xff]
    %v229 = vld [vmem:[#allocation8 + $0x10] sm:$0xff]
    %v230 = vld [vmem:[#allocation8 + $0x18] sm:$0xff]
    %v231 = vld [vmem:[#allocation8 + $0x20] sm:$0xff]
    %v232 = vld [vmem:[#allocation8 + $0x28] sm:$0xff]
    %v233 = vld [vmem:[#allocation8 + $0x30] sm:$0xff]
    %v234 = vld [vmem:[#allocation8 + $0x38] sm:$0xff]
    %v235 = vld [vmem:[#allocation8 + $0x40] sm:$0xff]
    %v236 = vld [vmem:[#allocation8 + $0x48] sm:$0xff]
    %v237 = vld [vmem:[#allocation8 + $0x50] sm:$0xff]
    %v238 = vld [vmem:[#allocation8 + $0x58] sm:$0xff]
    %v239 = vld [vmem:[#allocation8 + $0x60] sm:$0xff]
    %v240 = vld [vmem:[#allocation8 + $0x68] sm:$0xff]
    %v241 = vld [vmem:[#allocation8 + $0x70] sm:$0xff]
    %v242 = vld [vmem:[#allocation8 + $0x78] sm:$0xff]
    %v243 = vld [vmem:[%s6] sm:$0x1]
    %v245 = vperm.slane %v243, 0
    %247 = vmatpush.msra.mxu0 %v242
    %248 = vmatpush.msra.mxu0 %v241
    %249 = vmatpush.msra.mxu0 %v240
    %250 = vmatpush.msra.mxu0 %v239
    %251 = vmatpush.msra.mxu0 %v238
    %252 = vmatpush.msra.mxu0 %v237
    %253 = vmatpush.msra.mxu0 %v236
    %254 = vmatpush.msra.mxu0 %v235
    %255 = vmatpush.msra.mxu0 %v234
    %256 = vmatpush.msra.mxu0 %v233
    %257 = vmatpush.msra.mxu0 %v232
    %258 = vmatpush.msra.mxu0 %v231
    %259 = vmatpush.msra.mxu0 %v230
    %260 = vmatpush.msra.mxu0 %v229
    %261 = vmatpush.msra.mxu0 %v228
    %262 = vmatpush.msra.mxu0 %v227
    %263 = vmatmul.f32.gmra.mxu0 %v226
    %v264 = vpop.f32.mrf.mxu0
    %v265 = vadd.f32 %v245, %v264
    %266 = vdwg.mxu0
    %v267 = vmul.f32 %v265, 0.2
    %v268 = vmax.f32 %v265, %v267
    %v269 = vld [vmem:[#allocation10] sm:$0xff]
    %v270 = vld [vmem:[#allocation10 + $0x8] sm:$0xff]
    %v271 = vld [vmem:[#allocation10 + $0x10] sm:$0xff]
    %v272 = vld [vmem:[#allocation10 + $0x18] sm:$0xff]
    %v273 = vld [vmem:[#allocation10 + $0x20] sm:$0xff]
    %v274 = vld [vmem:[#allocation10 + $0x28] sm:$0xff]
    %v275 = vld [vmem:[#allocation10 + $0x30] sm:$0xff]
    %v276 = vld [vmem:[#allocation10 + $0x38] sm:$0xff]
    %v277 = vld [vmem:[#allocation10 + $0x40] sm:$0xff]
    %v278 = vld [vmem:[#allocation10 + $0x48] sm:$0xff]
    %v279 = vld [vmem:[#allocation10 + $0x50] sm:$0xff]
    %v280 = vld [vmem:[#allocation10 + $0x58] sm:$0xff]
    %v281 = vld [vmem:[#allocation10 + $0x60] sm:$0xff]
    %v282 = vld [vmem:[#allocation10 + $0x68] sm:$0xff]
    %v283 = vld [vmem:[#allocation10 + $0x70] sm:$0xff]
    %v284 = vld [vmem:[#allocation10 + $0x78] sm:$0xff]
    %v285 = vld [vmem:[%s8] sm:$0x1]
    %v287 = vperm.slane %v285, 0
    %289 = vmatpush.msra.mxu0 %v284
    %290 = vmatpush.msra.mxu0 %v283
    %291 = vmatpush.msra.mxu0 %v282
    %292 = vmatpush.msra.mxu0 %v281
    %293 = vmatpush.msra.mxu0 %v280
    %294 = vmatpush.msra.mxu0 %v279
    %295 = vmatpush.msra.mxu0 %v278
    %296 = vmatpush.msra.mxu0 %v277
    %297 = vmatpush.msra.mxu0 %v276
    %298 = vmatpush.msra.mxu0 %v275
    %299 = vmatpush.msra.mxu0 %v274
    %300 = vmatpush.msra.mxu0 %v273
    %301 = vmatpush.msra.mxu0 %v272
    %302 = vmatpush.msra.mxu0 %v271
    %303 = vmatpush.msra.mxu0 %v270
    %304 = vmatpush.msra.mxu0 %v269
    %305 = vmatmul.f32.gmra.mxu0 %v268
    %v306 = vpop.f32.mrf.mxu0
    %v307 = vadd.f32 %v287, %v306
    %308 = vdwg.mxu0
    %v309 = vmul.f32 %v307, 0.2
    %v310 = vmax.f32 %v307, %v309
    %v311 = vld [vmem:[#allocation11] sm:$0xff]
    %v312 = vld [vmem:[#allocation11 + $0x8] sm:$0xff]
    %v313 = vld [vmem:[#allocation11 + $0x10] sm:$0xff]
    %v314 = vld [vmem:[#allocation11 + $0x18] sm:$0xff]
    %v315 = vld [vmem:[#allocation11 + $0x20] sm:$0xff]
    %v316 = vld [vmem:[#allocation11 + $0x28] sm:$0xff]
    %v317 = vld [vmem:[#allocation11 + $0x30] sm:$0xff]
    %v318 = vld [vmem:[#allocation11 + $0x38] sm:$0xff]
    %v319 = vld [vmem:[#allocation11 + $0x40] sm:$0xff]
    %v320 = vld [vmem:[#allocation11 + $0x48] sm:$0xff]
    %v321 = vld [vmem:[#allocation11 + $0x50] sm:$0xff]
    %v322 = vld [vmem:[#allocation11 + $0x58] sm:$0xff]
    %v323 = vld [vmem:[#allocation11 + $0x60] sm:$0xff]
    %v324 = vld [vmem:[#allocation11 + $0x68] sm:$0xff]
    %v325 = vld [vmem:[#allocation11 + $0x70] sm:$0xff]
    %v326 = vld [vmem:[#allocation11 + $0x78] sm:$0xff]
    %v327 = vld [vmem:[%s10] sm:$0x1]
    %v329 = vperm.slane %v327, 0
    %331 = vmatpush.msra.mxu0 %v326
    %332 = vmatpush.msra.mxu0 %v325
    %333 = vmatpush.msra.mxu0 %v324
    %334 = vmatpush.msra.mxu0 %v323
    %335 = vmatpush.msra.mxu0 %v322
    %336 = vmatpush.msra.mxu0 %v321
    %337 = vmatpush.msra.mxu0 %v320
    %338 = vmatpush.msra.mxu0 %v319
    %339 = vmatpush.msra.mxu0 %v318
    %340 = vmatpush.msra.mxu0 %v317
    %341 = vmatpush.msra.mxu0 %v316
    %342 = vmatpush.msra.mxu0 %v315
    %343 = vmatpush.msra.mxu0 %v314
    %344 = vmatpush.msra.mxu0 %v313
    %345 = vmatpush.msra.mxu0 %v312
    %346 = vmatpush.msra.mxu0 %v311
    %347 = vmatmul.f32.gmra.mxu0 %v310
    %v348 = vpop.f32.mrf.mxu0
    %v349 = vadd.f32 %v329, %v348
    %350 = vdwg.mxu0
    %v351 = vmul.f32 %v349, 0.2
    %v352 = vmax.f32 %v349, %v351
    %v353 = vld [vmem:[#allocation13] sm:$0xff]
    %v354 = vld [vmem:[#allocation13 + $0x8] sm:$0xff]
    %v355 = vld [vmem:[#allocation13 + $0x10] sm:$0xff]
    %v356 = vld [vmem:[#allocation13 + $0x18] sm:$0xff]
    %v357 = vld [vmem:[#allocation13 + $0x20] sm:$0xff]
    %v358 = vld [vmem:[#allocation13 + $0x28] sm:$0xff]
    %v359 = vld [vmem:[#allocation13 + $0x30] sm:$0xff]
    %v360 = vld [vmem:[#allocation13 + $0x38] sm:$0xff]
    %v361 = vld [vmem:[#allocation13 + $0x40] sm:$0xff]
    %v362 = vld [vmem:[#allocation13 + $0x48] sm:$0xff]
    %v363 = vld [vmem:[#allocation13 + $0x50] sm:$0xff]
    %v364 = vld [vmem:[#allocation13 + $0x58] sm:$0xff]
    %v365 = vld [vmem:[#allocation13 + $0x60] sm:$0xff]
    %v366 = vld [vmem:[#allocation13 + $0x68] sm:$0xff]
    %v367 = vld [vmem:[#allocation13 + $0x70] sm:$0xff]
    %v368 = vld [vmem:[#allocation13 + $0x78] sm:$0xff]
    %v369 = vld [vmem:[%s12] sm:$0x1]
    %v371 = vperm.slane %v369, 0
    %373 = vmatpush.msra.mxu0 %v368
    %374 = vmatpush.msra.mxu0 %v367
    %375 = vmatpush.msra.mxu0 %v366
    %376 = vmatpush.msra.mxu0 %v365
    %377 = vmatpush.msra.mxu0 %v364
    %378 = vmatpush.msra.mxu0 %v363
    %379 = vmatpush.msra.mxu0 %v362
    %380 = vmatpush.msra.mxu0 %v361
    %381 = vmatpush.msra.mxu0 %v360
    %382 = vmatpush.msra.mxu0 %v359
    %383 = vmatpush.msra.mxu0 %v358
    %384 = vmatpush.msra.mxu0 %v357
    %385 = vmatpush.msra.mxu0 %v356
    %386 = vmatpush.msra.mxu0 %v355
    %387 = vmatpush.msra.mxu0 %v354
    %388 = vmatpush.msra.mxu0 %v353
    %389 = vmatmul.f32.gmra.mxu0 %v352
    %v390 = vpop.f32.mrf.mxu0
    %v391 = vadd.f32 %v371, %v390
    %392 = vdwg.mxu0
    %393 = vst [vmem:[#allocation14] sm:$0xff] %v391
    // Predicated region
    $region82: #{_mlp_forward_impl.1} parent=1 // pred_check
      _
    $region83: #{_mlp_forward_impl.1} parent=1 // pred_check_branch
      %395 = sbr.rel (0) target = $region85
    $region84: #{_mlp_forward_impl.1} parent=1 // pred_region
      %397 = vsyncadd [#allocation4], 0
      %s399 = sshll.u32 [#allocation14], 4
      %s400 = int_to_ptr.vmem [resolvable:$true] %s399
      %s401 = sshll.u32 %s13, 4
      %s402 = int_to_ptr.hbm [resolvable:$true] %s401
      %404 = dma.vmem_to_hbm [thread:$0]  %s400, 128, %s402, [#allocation4]
    $region85: #{_mlp_forward_impl.1} parent=1 // pred_fallthru
      _
    // Predicated region
    $region86: #{_mlp_forward_impl.1} parent=1 // pred_check
      _
    $region87: #{_mlp_forward_impl.1} parent=1 // pred_check_branch
      %406 = sbr.rel (0) target = $region89
    $region88: #{_mlp_forward_impl.1} parent=1 // pred_region
      %408 = dma.done [#allocation4], 128
    $region89: #{_mlp_forward_impl.1} parent=1 // pred_fallthru
      _
    %409 = vsyncpa [#allocation3], 1
    %410 = vsyncpa [#allocation6], 1
    %411 = vsyncpa [#allocation9], 1
    %412 = vsyncpa [#allocation12], 1
    %413 = vsyncpa [#allocation4], 1

// kernel: _mlp_forward_impl.1
$region0: #{_mlp_forward_impl.1}
  #allocation0 [shape = 'u32[]', space=smem, size = 0x4, offset = 0x4, fixed_abs, tag = 'smem constant byte address 0x4 - core index']
  #allocation1 [shape = 'u32[72,128]{1,0:T(1,128)}', space=vmem, size = 0x9000, scoped, tag = 'internal scratch']
  %s0 = inlined_call_operand.hbm [shape: f32[8,16], index: 0, kind: input, shape index: {}]
  %s1 = inlined_call_operand.hbm [shape: f32[16,128], index: 1, kind: input, shape index: {}]
  %s2 = inlined_call_operand.vmem [shape: f32[1,128], index: 2, kind: input, shape index: {}]
  %s3 = inlined_call_operand.hbm [shape: f32[128,128], index: 3, kind: input, shape index: {}]
  %s4 = inlined_call_operand.vmem [shape: f32[1,128], index: 4, kind: input, shape index: {}]
  %s5 = inlined_call_operand.hbm [shape: f32[128,128], index: 5, kind: input, shape index: {}]
  %s6 = inlined_call_operand.vmem [shape: f32[1,128], index: 6, kind: input, shape index: {}]
  %s7 = inlined_call_operand.hbm [shape: f32[128,128], index: 7, kind: input, shape index: {}]
  %s8 = inlined_call_operand.vmem [shape: f32[1,128], index: 8, kind: input, shape index: {}]
  %s9 = inlined_call_operand.hbm [shape: f32[128,128], index: 9, kind: input, shape index: {}]
  %s10 = inlined_call_operand.vmem [shape: f32[1,128], index: 10, kind: input, shape index: {}]
  %s11 = inlined_call_operand.hbm [shape: f32[128,128], index: 11, kind: input, shape index: {}]
  %s12 = inlined_call_operand.vmem [shape: f32[1,128], index: 12, kind: input, shape index: {}]
  %s13 = inlined_call_operand.hbm [shape: f32[8,128], index: 13, kind: output, shape index: {}]
  %s14 = sld [smem:[#allocation0]]
  $region90: #{_mlp_forward_impl.1} parent=0
    _
  %s16 = ssub.s32 1, %s14
  %s17 = scalar_select 0, %s16, %s14
  $region1: #{_mlp_forward_impl.1} parent=0
    #allocation2 [shape = 'u8[4096]{0}', space=vmem, size = 0x1000, scoped, tag = 'input window, operand 0, single buffered']
    #allocation3 [shape = 's32[1]{0}', space=sflag, size = 0x4, scoped, tag = 'scoped memory for _mlp_forward_impl.1']
    #allocation4 [shape = 's32[1]{0}', space=sflag, size = 0x4, scoped, tag = 'scoped memory for _mlp_forward_impl.1']
    #allocation5 [shape = 'u8[8192]{0}', space=vmem, size = 0x2000, scoped, tag = 'input window, operand 1, single buffered']
    #allocation6 [shape = 's32[1]{0}', space=sflag, size = 0x4, scoped, tag = 'scoped memory for _mlp_forward_impl.1']
    #allocation7 [shape = 'u8[65536]{0}', space=vmem, size = 0x10000, scoped, tag = 'input window, operand 3, single buffered']
    #allocation8 [shape = 'u8[65536]{0}', space=vmem, size = 0x10000, scoped, tag = 'input window, operand 5, single buffered']
    #allocation9 [shape = 's32[1]{0}', space=sflag, size = 0x4, scoped, tag = 'scoped memory for _mlp_forward_impl.1']
    #allocation10 [shape = 'u8[65536]{0}', space=vmem, size = 0x10000, scoped, tag = 'input window, operand 7, single buffered']
    #allocation11 [shape = 'u8[65536]{0}', space=vmem, size = 0x10000, scoped, tag = 'input window, operand 9, single buffered']
    #allocation12 [shape = 's32[1]{0}', space=sflag, size = 0x4, scoped, tag = 'scoped memory for _mlp_forward_impl.1']
    #allocation13 [shape = 'u8[65536]{0}', space=vmem, size = 0x10000, scoped, tag = 'input window, operand 11, single buffered']
    #allocation14 [shape = 'u8[4096]{0}', space=vmem, size = 0x1000, scoped, tag = 'output window, operand 0, single buffered']
    %18 = vsyncpa [#allocation3], 0
    %19 = vsyncpa [#allocation6], 0
    %20 = vsyncpa [#allocation9], 0
    %21 = vsyncpa [#allocation12], 0
    %22 = vsyncpa [#allocation4], 0
    // Predicated region
    $region2: #{_mlp_forward_impl.1} parent=1 // pred_check
      _
    $region3: #{_mlp_forward_impl.1} parent=1 // pred_check_branch
      %24 = sbr.rel (0) target = $region5
    $region4: #{_mlp_forward_impl.1} parent=1 // pred_region
      %26 = vsyncadd [#allocation3], 0
      %s28 = sshll.u32 %s0, 4
      %s29 = int_to_ptr.hbm [resolvable:$true] %s28
      %s30 = sshll.u32 [#allocation2], 4
      %s31 = int_to_ptr.vmem [resolvable:$true] %s30
      %33 = dma.hbm_to_vmem [thread:$0]  %s29, 128, %s31, [#allocation3]
    $region5: #{_mlp_forward_impl.1} parent=1 // pred_fallthru
      _
    // Predicated region
    $region6: #{_mlp_forward_impl.1} parent=1 // pred_check
      _
    $region7: #{_mlp_forward_impl.1} parent=1 // pred_check_branch
      %35 = sbr.rel (0) target = $region9
    $region8: #{_mlp_forward_impl.1} parent=1 // pred_region
      %37 = vsyncadd [#allocation6], 0
      %s38 = sshll.u32 %s1, 4
      %s39 = int_to_ptr.hbm [resolvable:$true] %s38
      %s40 = sshll.u32 [#allocation5], 4
      %s41 = int_to_ptr.vmem [resolvable:$true] %s40
      %46 = dma.hbm_to_vmem [thread:$0]  %s39, 256, %s41, [#allocation6], 128, 128, 8
    $region9: #{_mlp_forward_impl.1} parent=1 // pred_fallthru
      _
    // Predicated region
    $region10: #{_mlp_forward_impl.1} parent=1 // pred_check
      _
    $region11: #{_mlp_forward_impl.1} parent=1 // pred_check_branch
      %48 = sbr.rel (0) target = $region13
    $region12: #{_mlp_forward_impl.1} parent=1 // pred_region
      _
    $region13: #{_mlp_forward_impl.1} parent=1 // pred_fallthru
      _
    // Predicated region
    $region14: #{_mlp_forward_impl.1} parent=1 // pred_check
      _
    $region15: #{_mlp_forward_impl.1} parent=1 // pred_check_branch
      %50 = sbr.rel (0) target = $region17
    $region16: #{_mlp_forward_impl.1} parent=1 // pred_region
      %52 = vsyncadd [#allocation6], 0
      %s53 = sshll.u32 %s3, 4
      %s54 = int_to_ptr.hbm [resolvable:$true] %s53
      %s55 = sshll.u32 [#allocation7], 4
      %s56 = int_to_ptr.vmem [resolvable:$true] %s55
      %61 = dma.hbm_to_vmem [thread:$0]  %s54, 2048, %s56, [#allocation6], 128, 128, 8
    $region17: #{_mlp_forward_impl.1} parent=1 // pred_fallthru
      _
    // Predicated region
    $region18: #{_mlp_forward_impl.1} parent=1 // pred_check
      _
    $region19: #{_mlp_forward_impl.1} parent=1 // pred_check_branch
      %63 = sbr.rel (0) target = $region21
    $region20: #{_mlp_forward_impl.1} parent=1 // pred_region
      _
    $region21: #{_mlp_forward_impl.1} parent=1 // pred_fallthru
      _
    // Predicated region
    $region22: #{_mlp_forward_impl.1} parent=1 // pred_check
      _
    $region23: #{_mlp_forward_impl.1} parent=1 // pred_check_branch
      %65 = sbr.rel (0) target = $region25
    $region24: #{_mlp_forward_impl.1} parent=1 // pred_region
      %67 = vsyncadd [#allocation9], 0
      %s68 = sshll.u32 %s5, 4
      %s69 = int_to_ptr.hbm [resolvable:$true] %s68
      %s70 = sshll.u32 [#allocation8], 4
      %s71 = int_to_ptr.vmem [resolvable:$true] %s70
      %76 = dma.hbm_to_vmem [thread:$0]  %s69, 2048, %s71, [#allocation9], 128, 128, 8
    $region25: #{_mlp_forward_impl.1} parent=1 // pred_fallthru
      _
    // Predicated region
    $region26: #{_mlp_forward_impl.1} parent=1 // pred_check
      _
    $region27: #{_mlp_forward_impl.1} parent=1 // pred_check_branch
      %78 = sbr.rel (0) target = $region29
    $region28: #{_mlp_forward_impl.1} parent=1 // pred_region
      _
    $region29: #{_mlp_forward_impl.1} parent=1 // pred_fallthru
      _
    // Predicated region
    $region30: #{_mlp_forward_impl.1} parent=1 // pred_check
      _
    $region31: #{_mlp_forward_impl.1} parent=1 // pred_check_branch
      %80 = sbr.rel (0) target = $region33
    $region32: #{_mlp_forward_impl.1} parent=1 // pred_region
      %82 = vsyncadd [#allocation9], 0
      %s83 = sshll.u32 %s7, 4
      %s84 = int_to_ptr.hbm [resolvable:$true] %s83
      %s85 = sshll.u32 [#allocation10], 4
      %s86 = int_to_ptr.vmem [resolvable:$true] %s85
      %91 = dma.hbm_to_vmem [thread:$0]  %s84, 2048, %s86, [#allocation9], 128, 128, 8
    $region33: #{_mlp_forward_impl.1} parent=1 // pred_fallthru
      _
    // Predicated region
    $region34: #{_mlp_forward_impl.1} parent=1 // pred_check
      _
    $region35: #{_mlp_forward_impl.1} parent=1 // pred_check_branch
      %93 = sbr.rel (0) target = $region37
    $region36: #{_mlp_forward_impl.1} parent=1 // pred_region
      _
    $region37: #{_mlp_forward_impl.1} parent=1 // pred_fallthru
      _
    // Predicated region
    $region38: #{_mlp_forward_impl.1} parent=1 // pred_check
      _
    $region39: #{_mlp_forward_impl.1} parent=1 // pred_check_branch
      %95 = sbr.rel (0) target = $region41
    $region40: #{_mlp_forward_impl.1} parent=1 // pred_region
      %97 = vsyncadd [#allocation12], 0
      %s98 = sshll.u32 %s9, 4
      %s99 = int_to_ptr.hbm [resolvable:$true] %s98
      %s100 = sshll.u32 [#allocation11], 4
      %s101 = int_to_ptr.vmem [resolvable:$true] %s100
      %106 = dma.hbm_to_vmem [thread:$0]  %s99, 2048, %s101, [#allocation12], 128, 128, 8
    $region41: #{_mlp_forward_impl.1} parent=1 // pred_fallthru
      _
    // Predicated region
    $region42: #{_mlp_forward_impl.1} parent=1 // pred_check
      _
    $region43: #{_mlp_forward_impl.1} parent=1 // pred_check_branch
      %108 = sbr.rel (0) target = $region45
    $region44: #{_mlp_forward_impl.1} parent=1 // pred_region
      _
    $region45: #{_mlp_forward_impl.1} parent=1 // pred_fallthru
      _
    // Predicated region
    $region46: #{_mlp_forward_impl.1} parent=1 // pred_check
      _
    $region47: #{_mlp_forward_impl.1} parent=1 // pred_check_branch
      %110 = sbr.rel (0) target = $region49
    $region48: #{_mlp_forward_impl.1} parent=1 // pred_region
      %112 = vsyncadd [#allocation12], 0
      %s113 = sshll.u32 %s11, 4
      %s114 = int_to_ptr.hbm [resolvable:$true] %s113
      %s115 = sshll.u32 [#allocation13], 4
      %s116 = int_to_ptr.vmem [resolvable:$true] %s115
      %121 = dma.hbm_to_vmem [thread:$0]  %s114, 2048, %s116, [#allocation12], 128, 128, 8
    $region49: #{_mlp_forward_impl.1} parent=1 // pred_fallthru
      _
    // Predicated region
    $region50: #{_mlp_forward_impl.1} parent=1 // pred_check
      _
    $region51: #{_mlp_forward_impl.1} parent=1 // pred_check_branch
      %123 = sbr.rel (0) target = $region53
    $region52: #{_mlp_forward_impl.1} parent=1 // pred_region
      _
    $region53: #{_mlp_forward_impl.1} parent=1 // pred_fallthru
      _
    // Predicated region
    $region54: #{_mlp_forward_impl.1} parent=1 // pred_check
      _
    $region55: #{_mlp_forward_impl.1} parent=1 // pred_check_branch
      %125 = sbr.rel (0) target = $region57
    $region56: #{_mlp_forward_impl.1} parent=1 // pred_region
      %127 = dma.done [#allocation3], 128
    $region57: #{_mlp_forward_impl.1} parent=1 // pred_fallthru
      _
    // Predicated region
    $region58: #{_mlp_forward_impl.1} parent=1 // pred_check
      _
    $region59: #{_mlp_forward_impl.1} parent=1 // pred_check_branch
      %129 = sbr.rel (0) target = $region61
    $region60: #{_mlp_forward_impl.1} parent=1 // pred_region
      %131 = dma.done [#allocation6], 256
    $region61: #{_mlp_forward_impl.1} parent=1 // pred_fallthru
      _
    // Predicated region
    $region62: #{_mlp_forward_impl.1} parent=1 // pred_check
      _
    $region63: #{_mlp_forward_impl.1} parent=1 // pred_check_branch
      %133 = sbr.rel (0) target = $region65
    $region64: #{_mlp_forward_impl.1} parent=1 // pred_region
      %135 = dma.done [#allocation6], 2048
    $region65: #{_mlp_forward_impl.1} parent=1 // pred_fallthru
      _
    // Predicated region
    $region66: #{_mlp_forward_impl.1} parent=1 // pred_check
      _
    $region67: #{_mlp_forward_impl.1} parent=1 // pred_check_branch
      %137 = sbr.rel (0) target = $region69
    $region68: #{_mlp_forward_impl.1} parent=1 // pred_region
      %139 = dma.done [#allocation9], 2048
    $region69: #{_mlp_forward_impl.1} parent=1 // pred_fallthru
      _
    // Predicated region
    $region70: #{_mlp_forward_impl.1} parent=1 // pred_check
      _
    $region71: #{_mlp_forward_impl.1} parent=1 // pred_check_branch
      %141 = sbr.rel (0) target = $region73
    $region72: #{_mlp_forward_impl.1} parent=1 // pred_region
      %143 = dma.done [#allocation9], 2048
    $region73: #{_mlp_forward_impl.1} parent=1 // pred_fallthru
      _
    // Predicated region
    $region74: #{_mlp_forward_impl.1} parent=1 // pred_check
      _
    $region75: #{_mlp_forward_impl.1} parent=1 // pred_check_branch
      %145 = sbr.rel (0) target = $region77
    $region76: #{_mlp_forward_impl.1} parent=1 // pred_region
      %147 = dma.done [#allocation12], 2048
    $region77: #{_mlp_forward_impl.1} parent=1 // pred_fallthru
      _
    // Predicated region
    $region78: #{_mlp_forward_impl.1} parent=1 // pred_check
      _
    $region79: #{_mlp_forward_impl.1} parent=1 // pred_check_branch
      %149 = sbr.rel (0) target = $region81
    $region80: #{_mlp_forward_impl.1} parent=1 // pred_region
      %151 = dma.done [#allocation12], 2048
    $region81: #{_mlp_forward_impl.1} parent=1 // pred_fallthru
      _
    %v152 = vld [vmem:[#allocation2] sm:$0xff]
    %v153 = vld [vmem:[#allocation5] sm:$0xff]
    %v154 = vld [vmem:[#allocation5 + $0x8] sm:$0xff]
    %v155 = vld [vmem:[%s2] sm:$0x1]
    %v157 = vperm.slane %v155, 0
    %vm159 = vcmask 130048
    %v161 = vsel %vm159, %v152, 0
    %163 = vmatpush.msra.mxu0 0.0
    %164 = vmatpush.msra.mxu0 0.0
    %165 = vmatpush.msra.mxu0 0.0
    %166 = vmatpush.msra.mxu0 0.0
    %167 = vmatpush.msra.mxu0 0.0
    %168 = vmatpush.msra.mxu0 0.0
    %169 = vmatpush.msra.mxu0 0.0
    %170 = vmatpush.msra.mxu0 0.0
    %171 = vmatpush.msra.mxu0 0.0
    %172 = vmatpush.msra.mxu0 0.0
    %173 = vmatpush.msra.mxu0 0.0
    %174 = vmatpush.msra.mxu0 0.0
    %175 = vmatpush.msra.mxu0 0.0
    %176 = vmatpush.msra.mxu0 0.0
    %177 = vmatpush.msra.mxu0 %v154
    %178 = vmatpush.msra.mxu0 %v153
    %179 = vmatmul.f32.gmra.mxu0 %v161
    %v180 = vpop.f32.mrf.mxu0
    %v181 = vadd.f32 %v157, %v180
    %182 = vdwg.mxu0
    %v183 = vmul.f32 %v181, 0.2
    %v184 = vmax.f32 %v181, %v183
    %v185 = vld [vmem:[#allocation7] sm:$0xff]
    %v186 = vld [vmem:[#allocation7 + $0x8] sm:$0xff]
    %v187 = vld [vmem:[#allocation7 + $0x10] sm:$0xff]
    %v188 = vld [vmem:[#allocation7 + $0x18] sm:$0xff]
    %v189 = vld [vmem:[#allocation7 + $0x20] sm:$0xff]
    %v190 = vld [vmem:[#allocation7 + $0x28] sm:$0xff]
    %v191 = vld [vmem:[#allocation7 + $0x30] sm:$0xff]
    %v192 = vld [vmem:[#allocation7 + $0x38] sm:$0xff]
    %v193 = vld [vmem:[#allocation7 + $0x40] sm:$0xff]
    %v194 = vld [vmem:[#allocation7 + $0x48] sm:$0xff]
    %v195 = vld [vmem:[#allocation7 + $0x50] sm:$0xff]
    %v196 = vld [vmem:[#allocation7 + $0x58] sm:$0xff]
    %v197 = vld [vmem:[#allocation7 + $0x60] sm:$0xff]
    %v198 = vld [vmem:[#allocation7 + $0x68] sm:$0xff]
    %v199 = vld [vmem:[#allocation7 + $0x70] sm:$0xff]
    %v200 = vld [vmem:[#allocation7 + $0x78] sm:$0xff]
    %v201 = vld [vmem:[%s4] sm:$0x1]
    %v203 = vperm.slane %v201, 0
    %205 = vmatpush.msra.mxu0 %v200
    %206 = vmatpush.msra.mxu0 %v199
    %207 = vmatpush.msra.mxu0 %v198
    %208 = vmatpush.msra.mxu0 %v197
    %209 = vmatpush.msra.mxu0 %v196
    %210 = vmatpush.msra.mxu0 %v195
    %211 = vmatpush.msra.mxu0 %v194
    %212 = vmatpush.msra.mxu0 %v193
    %213 = vmatpush.msra.mxu0 %v192
    %214 = vmatpush.msra.mxu0 %v191
    %215 = vmatpush.msra.mxu0 %v190
    %216 = vmatpush.msra.mxu0 %v189
    %217 = vmatpush.msra.mxu0 %v188
    %218 = vmatpush.msra.mxu0 %v187
    %219 = vmatpush.msra.mxu0 %v186
    %220 = vmatpush.msra.mxu0 %v185
    %221 = vmatmul.f32.gmra.mxu0 %v184
    %v222 = vpop.f32.mrf.mxu0
    %v223 = vadd.f32 %v203, %v222
    %224 = vdwg.mxu0
    %v225 = vmul.f32 %v223, 0.2
    %v226 = vmax.f32 %v223, %v225
    %v227 = vld [vmem:[#allocation8] sm:$0xff]
    %v228 = vld [vmem:[#allocation8 + $0x8] sm:$0xff]
    %v229 = vld [vmem:[#allocation8 + $0x10] sm:$0xff]
    %v230 = vld [vmem:[#allocation8 + $0x18] sm:$0xff]
    %v231 = vld [vmem:[#allocation8 + $0x20] sm:$0xff]
    %v232 = vld [vmem:[#allocation8 + $0x28] sm:$0xff]
    %v233 = vld [vmem:[#allocation8 + $0x30] sm:$0xff]
    %v234 = vld [vmem:[#allocation8 + $0x38] sm:$0xff]
    %v235 = vld [vmem:[#allocation8 + $0x40] sm:$0xff]
    %v236 = vld [vmem:[#allocation8 + $0x48] sm:$0xff]
    %v237 = vld [vmem:[#allocation8 + $0x50] sm:$0xff]
    %v238 = vld [vmem:[#allocation8 + $0x58] sm:$0xff]
    %v239 = vld [vmem:[#allocation8 + $0x60] sm:$0xff]
    %v240 = vld [vmem:[#allocation8 + $0x68] sm:$0xff]
    %v241 = vld [vmem:[#allocation8 + $0x70] sm:$0xff]
    %v242 = vld [vmem:[#allocation8 + $0x78] sm:$0xff]
    %v243 = vld [vmem:[%s6] sm:$0x1]
    %v245 = vperm.slane %v243, 0
    %247 = vmatpush.msra.mxu0 %v242
    %248 = vmatpush.msra.mxu0 %v241
    %249 = vmatpush.msra.mxu0 %v240
    %250 = vmatpush.msra.mxu0 %v239
    %251 = vmatpush.msra.mxu0 %v238
    %252 = vmatpush.msra.mxu0 %v237
    %253 = vmatpush.msra.mxu0 %v236
    %254 = vmatpush.msra.mxu0 %v235
    %255 = vmatpush.msra.mxu0 %v234
    %256 = vmatpush.msra.mxu0 %v233
    %257 = vmatpush.msra.mxu0 %v232
    %258 = vmatpush.msra.mxu0 %v231
    %259 = vmatpush.msra.mxu0 %v230
    %260 = vmatpush.msra.mxu0 %v229
    %261 = vmatpush.msra.mxu0 %v228
    %262 = vmatpush.msra.mxu0 %v227
    %263 = vmatmul.f32.gmra.mxu0 %v226
    %v264 = vpop.f32.mrf.mxu0
    %v265 = vadd.f32 %v245, %v264
    %266 = vdwg.mxu0
    %v267 = vmul.f32 %v265, 0.2
    %v268 = vmax.f32 %v265, %v267
    %v269 = vld [vmem:[#allocation10] sm:$0xff]
    %v270 = vld [vmem:[#allocation10 + $0x8] sm:$0xff]
    %v271 = vld [vmem:[#allocation10 + $0x10] sm:$0xff]
    %v272 = vld [vmem:[#allocation10 + $0x18] sm:$0xff]
    %v273 = vld [vmem:[#allocation10 + $0x20] sm:$0xff]
    %v274 = vld [vmem:[#allocation10 + $0x28] sm:$0xff]
    %v275 = vld [vmem:[#allocation10 + $0x30] sm:$0xff]
    %v276 = vld [vmem:[#allocation10 + $0x38] sm:$0xff]
    %v277 = vld [vmem:[#allocation10 + $0x40] sm:$0xff]
    %v278 = vld [vmem:[#allocation10 + $0x48] sm:$0xff]
    %v279 = vld [vmem:[#allocation10 + $0x50] sm:$0xff]
    %v280 = vld [vmem:[#allocation10 + $0x58] sm:$0xff]
    %v281 = vld [vmem:[#allocation10 + $0x60] sm:$0xff]
    %v282 = vld [vmem:[#allocation10 + $0x68] sm:$0xff]
    %v283 = vld [vmem:[#allocation10 + $0x70] sm:$0xff]
    %v284 = vld [vmem:[#allocation10 + $0x78] sm:$0xff]
    %v285 = vld [vmem:[%s8] sm:$0x1]
    %v287 = vperm.slane %v285, 0
    %289 = vmatpush.msra.mxu0 %v284
    %290 = vmatpush.msra.mxu0 %v283
    %291 = vmatpush.msra.mxu0 %v282
    %292 = vmatpush.msra.mxu0 %v281
    %293 = vmatpush.msra.mxu0 %v280
    %294 = vmatpush.msra.mxu0 %v279
    %295 = vmatpush.msra.mxu0 %v278
    %296 = vmatpush.msra.mxu0 %v277
    %297 = vmatpush.msra.mxu0 %v276
    %298 = vmatpush.msra.mxu0 %v275
    %299 = vmatpush.msra.mxu0 %v274
    %300 = vmatpush.msra.mxu0 %v273
    %301 = vmatpush.msra.mxu0 %v272
    %302 = vmatpush.msra.mxu0 %v271
    %303 = vmatpush.msra.mxu0 %v270
    %304 = vmatpush.msra.mxu0 %v269
    %305 = vmatmul.f32.gmra.mxu0 %v268
    %v306 = vpop.f32.mrf.mxu0
    %v307 = vadd.f32 %v287, %v306
    %308 = vdwg.mxu0
    %v309 = vmul.f32 %v307, 0.2
    %v310 = vmax.f32 %v307, %v309
    %v311 = vld [vmem:[#allocation11] sm:$0xff]
    %v312 = vld [vmem:[#allocation11 + $0x8] sm:$0xff]
    %v313 = vld [vmem:[#allocation11 + $0x10] sm:$0xff]
    %v314 = vld [vmem:[#allocation11 + $0x18] sm:$0xff]
    %v315 = vld [vmem:[#allocation11 + $0x20] sm:$0xff]
    %v316 = vld [vmem:[#allocation11 + $0x28] sm:$0xff]
    %v317 = vld [vmem:[#allocation11 + $0x30] sm:$0xff]
    %v318 = vld [vmem:[#allocation11 + $0x38] sm:$0xff]
    %v319 = vld [vmem:[#allocation11 + $0x40] sm:$0xff]
    %v320 = vld [vmem:[#allocation11 + $0x48] sm:$0xff]
    %v321 = vld [vmem:[#allocation11 + $0x50] sm:$0xff]
    %v322 = vld [vmem:[#allocation11 + $0x58] sm:$0xff]
    %v323 = vld [vmem:[#allocation11 + $0x60] sm:$0xff]
    %v324 = vld [vmem:[#allocation11 + $0x68] sm:$0xff]
    %v325 = vld [vmem:[#allocation11 + $0x70] sm:$0xff]
    %v326 = vld [vmem:[#allocation11 + $0x78] sm:$0xff]
    %v327 = vld [vmem:[%s10] sm:$0x1]
    %v329 = vperm.slane %v327, 0
    %331 = vmatpush.msra.mxu0 %v326
    %332 = vmatpush.msra.mxu0 %v325
    %333 = vmatpush.msra.mxu0 %v324
    %334 = vmatpush.msra.mxu0 %v323
    %335 = vmatpush.msra.mxu0 %v322
    %336 = vmatpush.msra.mxu0 %v321
    %337 = vmatpush.msra.mxu0 %v320
    %338 = vmatpush.msra.mxu0 %v319
    %339 = vmatpush.msra.mxu0 %v318
    %340 = vmatpush.msra.mxu0 %v317
    %341 = vmatpush.msra.mxu0 %v316
    %342 = vmatpush.msra.mxu0 %v315
    %343 = vmatpush.msra.mxu0 %v314
    %344 = vmatpush.msra.mxu0 %v313
    %345 = vmatpush.msra.mxu0 %v312
    %346 = vmatpush.msra.mxu0 %v311
    %347 = vmatmul.f32.gmra.mxu0 %v310
    %v348 = vpop.f32.mrf.mxu0
    %v349 = vadd.f32 %v329, %v348
    %350 = vdwg.mxu0
    %v351 = vmul.f32 %v349, 0.2
    %v352 = vmax.f32 %v349, %v351
    %v353 = vld [vmem:[#allocation13] sm:$0xff]
    %v354 = vld [vmem:[#allocation13 + $0x8] sm:$0xff]
    %v355 = vld [vmem:[#allocation13 + $0x10] sm:$0xff]
    %v356 = vld [vmem:[#allocation13 + $0x18] sm:$0xff]
    %v357 = vld [vmem:[#allocation13 + $0x20] sm:$0xff]
    %v358 = vld [vmem:[#allocation13 + $0x28] sm:$0xff]
    %v359 = vld [vmem:[#allocation13 + $0x30] sm:$0xff]
    %v360 = vld [vmem:[#allocation13 + $0x38] sm:$0xff]
    %v361 = vld [vmem:[#allocation13 + $0x40] sm:$0xff]
    %v362 = vld [vmem:[#allocation13 + $0x48] sm:$0xff]
    %v363 = vld [vmem:[#allocation13 + $0x50] sm:$0xff]
    %v364 = vld [vmem:[#allocation13 + $0x58] sm:$0xff]
    %v365 = vld [vmem:[#allocation13 + $0x60] sm:$0xff]
    %v366 = vld [vmem:[#allocation13 + $0x68] sm:$0xff]
    %v367 = vld [vmem:[#allocation13 + $0x70] sm:$0xff]
    %v368 = vld [vmem:[#allocation13 + $0x78] sm:$0xff]
    %v369 = vld [vmem:[%s12] sm:$0x1]
    %v371 = vperm.slane %v369, 0
    %373 = vmatpush.msra.mxu0 %v368
    %374 = vmatpush.msra.mxu0 %v367
    %375 = vmatpush.msra.mxu0 %v366
    %376 = vmatpush.msra.mxu0 %v365
    %377 = vmatpush.msra.mxu0 %v364
    %378 = vmatpush.msra.mxu0 %v363
    %379 = vmatpush.msra.mxu0 %v362
    %380 = vmatpush.msra.mxu0 %v361
    %381 = vmatpush.msra.mxu0 %v360
    %382 = vmatpush.msra.mxu0 %v359
    %383 = vmatpush.msra.mxu0 %v358
    %384 = vmatpush.msra.mxu0 %v357
    %385 = vmatpush.msra.mxu0 %v356
    %386 = vmatpush.msra.mxu0 %v355
    %387 = vmatpush.msra.mxu0 %v354
    %388 = vmatpush.msra.mxu0 %v353
    %389 = vmatmul.f32.gmra.mxu0 %v352
    %v390 = vpop.f32.mrf.mxu0
    %v391 = vadd.f32 %v371, %v390
    %392 = vdwg.mxu0
    %393 = vst [vmem:[#allocation14] sm:$0xff] %v391
    // Predicated region
    $region82: #{_mlp_forward_impl.1} parent=1 // pred_check
      _
    $region83: #{_mlp_forward_impl.1} parent=1 // pred_check_branch
      %395 = sbr.rel (0) target = $region85
    $region84: #{_mlp_forward_impl.1} parent=1 // pred_region
      %397 = vsyncadd [#allocation4], 0
      %s399 = sshll.u32 [#allocation14], 4
      %s400 = int_to_ptr.vmem [resolvable:$true] %s399
      %s401 = sshll.u32 %s13, 4
      %s402 = int_to_ptr.hbm [resolvable:$true] %s401
      %404 = dma.vmem_to_hbm [thread:$0]  %s400, 128, %s402, [#allocation4]
    $region85: #{_mlp_forward_impl.1} parent=1 // pred_fallthru
      _
    // Predicated region
    $region86: #{_mlp_forward_impl.1} parent=1 // pred_check
      _
    $region87: #{_mlp_forward_impl.1} parent=1 // pred_check_branch
      %406 = sbr.rel (0) target = $region89
    $region88: #{_mlp_forward_impl.1} parent=1 // pred_region
      %408 = dma.done [#allocation4], 128
    $region89: #{_mlp_forward_impl.1} parent=1 // pred_fallthru
      _
    %409 = vsyncpa [#allocation3], 1
    %410 = vsyncpa [#allocation6], 1
    %411 = vsyncpa [#allocation9], 1
    %412 = vsyncpa [#allocation12], 1
    %413 = vsyncpa [#allocation4], 1

</llo_original>
